<compile_context>
chip_gen: v6e
topology: v6e:2x2x1
jax: 0.10.0
libtpu: 0.0.40
codegen_flags: <defaults>
</compile_context>

<pallas_src>
import jax
import jax.numpy as jnp
from jax.experimental import pallas as pl
from jax.experimental.pallas import tpu as pltpu

EPS = 1e-5      # nn.BatchNorm2d default eps
KH = KW = 3     # kernel size of both convs
LANE = 128


def _round_up(n, m):
    return ((n + m - 1) // m) * m


# ----------------------------- fused Pallas kernel --------------------------

def _make_block_kernel(N, H, W, C1, C2, L1, L2):
    """Fused conv->bn->relu->conv->bn->relu kernel (all shapes static)."""
    H1, W1 = H - (KH - 1), W - (KW - 1)      # after conv1
    H2, W2 = H1 - (KH - 1), W1 - (KW - 1)    # after conv2
    NH = N * H
    R1 = NH + (KH - 1)                       # conv1 rows (x row-padded by 4 in wrapper)
    R2 = NH                                  # conv2 / output rows
    inv_cnt1 = 1.0 / float(N * H1 * W1)      # BN1 normalizer (precomputed 1/M)
    inv_cnt2 = 1.0 / float(N * H2 * W2)      # BN2 normalizer

    def ch_sum_sel(Lpad, Lvalid, C):
        # (Lpad, C) 0/1 selector: lane -> per-channel sum (pad lanes zeroed)
        lane = jax.lax.broadcasted_iota(jnp.int32, (Lpad, C), 0)
        ch = jax.lax.broadcasted_iota(jnp.int32, (Lpad, C), 1)
        return jnp.where((lane % C == ch) & (lane < Lvalid), 1.0, 0.0)

    def ch_bcast_sel(C, Lpad, Lvalid):
        # (C, Lpad) 0/1 selector: channel -> lane broadcast (pad lanes zeroed)
        ch = jax.lax.broadcasted_iota(jnp.int32, (C, Lpad), 0)
        lane = jax.lax.broadcasted_iota(jnp.int32, (C, Lpad), 1)
        return jnp.where((lane % C == ch) & (lane < Lvalid), 1.0, 0.0)

    def row_mask(R, Hvalid):
        # valid conv-output rows: within a real image and h < Hvalid
        r = jax.lax.broadcasted_iota(jnp.int32, (R, 1), 0)
        return jnp.where(((r % H) < Hvalid) & (r < NH), 1.0, 0.0)

    def bn_relu(y, mask, s_sum, s_bcast, inv_cnt, g, beta):
        # Single-pass batch stats (training mode): one elementwise pass builds
        # [sum(y*m); sum(y*y*m)], one channel-sum dot, var = E[x^2] - mean^2,
        # one stacked channel->lane broadcast dot for (scale, shift).
        ym = y * mask
        p = jnp.concatenate([jnp.sum(ym, axis=0, keepdims=True),
                             jnp.sum(ym * y, axis=0, keepdims=True)], axis=0)
        stats = jnp.dot(p, s_sum, preferred_element_type=jnp.float32) * inv_cnt
        mean_c = stats[0:1]
        var_c = stats[1:2] - mean_c * mean_c
        scale_c = jax.lax.rsqrt(var_c + EPS) * g
        shift_c = beta - mean_c * scale_c
        ss = jnp.dot(jnp.concatenate([scale_c, shift_c], axis=0), s_bcast,
                     preferred_element_type=jnp.float32)
        return jnp.maximum(y * ss[0:1] + ss[1:2], 0.0)

    def kernel(x_ref, w1_ref, w2_ref, g_ref, b_ref, o_ref, a1_ref):
        g = g_ref[...]          # (1, C2)  bn weight
        beta = b_ref[...]       # (1, C2)  bn bias

        # ---- conv1: 3 row-shifted, full-width, lane-aligned banded matmuls ----
        y1 = jnp.zeros((R1, L1), jnp.float32)
        for i in range(KH):
            y1 = y1 + jnp.dot(x_ref[i:i + R1, :], w1_ref[i],
                              preferred_element_type=jnp.float32)

        # ---- bn1 (batch stats over valid rows, f32) + relu ----
        a1 = bn_relu(y1, row_mask(R1, H1),
                     ch_sum_sel(L1, W1 * C2, C2),
                     ch_bcast_sel(C2, L1, W1 * C2),
                     inv_cnt1, g, beta)
        a1_ref[...] = a1.astype(jnp.bfloat16)      # VMEM-resident, bf16 for MXU

        # ---- conv2: 3 row-shifted banded matmuls on the activation matrix ----
        y2 = jnp.zeros((R2, L2), jnp.float32)
        for i in range(KH):
            y2 = y2 + jnp.dot(a1_ref[i:i + R2, :], w2_ref[i],
                              preferred_element_type=jnp.float32)

        # ---- bn2 (fresh batch stats, same gamma/beta) + relu, dense store ----
        o_ref[...] = bn_relu(y2, row_mask(R2, H2),
                             ch_sum_sel(L2, W2 * C2, C2),
                             ch_bcast_sel(C2, L2, W2 * C2),
                             inv_cnt2, g, beta)

    return kernel


# ---------------------- one-time parameter preparation -----------------------

def _banded_weights(w, W_in, Lin, Lout):
    """(C_out, C_in, 3, 3) conv weight -> (KH, Lin, Lout) bf16 banded matrices.

    Block (w_in, w_out) of matrix i is tap (i, j=w_in-w_out) when 0<=j<KW.
    Rows beyond W_in*C_in and columns beyond W_out*C_out are zero padding.
    """
    C_out, C_in = w.shape[0], w.shape[1]
    W_out = W_in - (KW - 1)
    taps = jnp.transpose(w, (2, 3, 1, 0))                      # (KH, KW, C_in, C_out)
    j = jnp.arange(W_in)[:, None] - jnp.arange(W_out)[None, :]  # (W_in, W_out)
    valid = ((j >= 0) & (j < KW)).astype(w.dtype)
    jc = jnp.clip(j, 0, KW - 1)
    T = taps[:, jc] * valid[None, :, :, None, None]            # (KH,W_in,W_out,C_in,C_out)
    B = jnp.transpose(T, (0, 1, 3, 2, 4)).reshape(KH, W_in * C_in, W_out * C_out)
    B = jnp.pad(B, ((0, 0),
                    (0, Lin - W_in * C_in),
                    (0, Lout - W_out * C_out)))
    return B.astype(jnp.bfloat16)


def prepare_block_params(w1, w2, gamma, beta, H, W):
    """Precompute MXU-ready banded bf16 weights and f32 BN affine params."""
    C2, C1 = w1.shape[0], w1.shape[1]
    W1 = W - (KW - 1)
    W2 = W1 - (KW - 1)
    LX = W * C1                                   # conv1 input lanes (K dim)
    L1 = max(LANE, _round_up(W1 * C2, LANE))      # conv1 output lanes (padded)
    L2 = max(LANE, _round_up(W2 * C2, LANE))      # conv2 output lanes (padded)

    w1b = _banded_weights(w1, W, LX, L1)          # (3, LX, L1)
    w2b = _banded_weights(w2, W1, L1, L2)         # (3, L1, L2)

    g = gamma.reshape(1, C2).astype(jnp.float32)
    b = beta.reshape(1, C2).astype(jnp.float32)
    return dict(w1b=w1b, w2b=w2b, g=g, b=b)


# --------------------------------- wrapper -----------------------------------

def block_forward(x_nchw, params):
    """Forward pass of Block. x_nchw: (N, C_in, H, W) float32."""
    N, C1, H, W = x_nchw.shape
    C2 = params["g"].shape[-1]
    L1 = params["w1b"].shape[2]
    L2 = params["w2b"].shape[2]
    H2, W2 = H - 4, W - 4
    NH = N * H
    R1 = NH + (KH - 1)

    # NHWC, rows = (n, h), lanes = (w, c); pad 4 zero rows so every matmul and
    # the output store are full-height (no partial stores, no concat in kernel).
    x2 = (jnp.transpose(x_nchw, (0, 2, 3, 1))
          .reshape(NH, W * C1).astype(jnp.bfloat16))
    x2 = jnp.pad(x2, ((0, 2 * (KH - 1)), (0, 0)))              # (NH+4, W*C1)

    kernel = _make_block_kernel(N, H, W, C1, C2, L1, L2)

    def full_spec(shape):
        return pl.BlockSpec(shape, lambda: (0,) * len(shape))

    out = pl.pallas_call(
        kernel,
        out_shape=jax.ShapeDtypeStruct((NH, L2), jnp.float32),
        in_specs=[full_spec(x2.shape),
                  full_spec(params["w1b"].shape),
                  full_spec(params["w2b"].shape),
                  full_spec(params["g"].shape),
                  full_spec(params["b"].shape)],
        out_specs=full_spec((NH, L2)),
        scratch_shapes=[pltpu.VMEM((R1, L1), jnp.bfloat16)],
        compiler_params=pltpu.CompilerParams(vmem_limit_bytes=32 * 1024 * 1024),
    )(x2, params["w1b"], params["w2b"], params["g"], params["b"])

    # row/lane-padded output -> single reshape + static slice (no python loop)
    y = out.reshape(N, H, L2)[:, :H2, :W2 * C2].reshape(N, H2, W2, C2)
    return jnp.transpose(y, (0, 3, 1, 2))


# --------------------------- pure-JAX reference ------------------------------

def _ref_block(x, w1, w2, gamma, beta):
    def conv(x, w):
        return jax.lax.conv_general_dilated(
            x, w, (1, 1), 'VALID',
            dimension_numbers=('NCHW', 'OIHW', 'NCHW'))

    def bn_relu_ref(x):
        mean = x.mean(axis=(0, 2, 3), keepdims=True)
        var = ((x - mean) ** 2).mean(axis=(0, 2, 3), keepdims=True)
        g = gamma.reshape(1, -1, 1, 1)
        b = beta.reshape(1, -1, 1, 1)
        return jnp.maximum((x - mean) / jnp.sqrt(var + EPS) * g + b, 0.0)

    x = bn_relu_ref(conv(x, w1))
    x = bn_relu_ref(conv(x, w2))
    return x


# --------------------------------- main --------------------------------------

if __name__ == "__main__":
    key = jax.random.PRNGKey(0)
    k_x, k_w1, k_w2 = jax.random.split(key, 3)

    N, C_in, C_out, H, W = 2, 4, 8, 16, 16

    x = jax.random.normal(k_x, (N, C_in, H, W), dtype=jnp.float32)
    # Synthetic parameters (shapes from nn.Conv2d / nn.BatchNorm2d):
    w1 = jax.random.normal(k_w1, (C_out, C_in, 3, 3), dtype=jnp.float32) * 0.1
    w2 = jax.random.normal(k_w2, (C_out, C_out, 3, 3), dtype=jnp.float32) * 0.1
    gamma = jnp.ones((C_out,), dtype=jnp.float32)   # bn.weight default init
    beta = jnp.zeros((C_out,), dtype=jnp.float32)   # bn.bias default init

    params = prepare_block_params(w1, w2, gamma, beta, H, W)   # once, offline

    out = jax.jit(block_forward)(x, params)
    out = jax.block_until_ready(out)

    assert out.shape == (N, C_out, H - 4, W - 4), out.shape

    ref = _ref_block(x, w1, w2, gamma, beta)
    max_err = float(jnp.max(jnp.abs(out - ref)))
    # bf16 MXU operands (f32 accumulation) -> looser tolerance vs f32 reference
    assert jnp.allclose(out, ref, atol=5e-2, rtol=5e-2), max_err

    print("KERNEL_OK")
</pallas_src>

<mosaic_0001>
module attributes {stable_mosaic.version = 11 : i64} {
  func.func @kernel(%arg0: memref<36x64xbf16, #tpu.memory_space<vmem>>, %arg1: memref<3x64x128xbf16, #tpu.memory_space<vmem>>, %arg2: memref<3x128x128xbf16, #tpu.memory_space<vmem>>, %arg3: memref<1x8xf32, #tpu.memory_space<vmem>>, %arg4: memref<1x8xf32, #tpu.memory_space<vmem>>, %arg5: memref<32x128xf32, #tpu.memory_space<vmem>>, %arg6: memref<34x128xbf16, #tpu.memory_space<vmem>>) attributes {dimension_semantics = [], scalar_prefetch = 0 : i64, scratch_operands = 1 : i64, tpu.core_type = #tpu.core_type<tc>} {
    %c0 = arith.constant 0 : index
    %c0_0 = arith.constant 0 : index
    %0 = vector.load %arg3[%c0, %c0_0] : memref<1x8xf32, #tpu.memory_space<vmem>>, vector<1x8xf32>
    %c0_1 = arith.constant 0 : index
    %c0_2 = arith.constant 0 : index
    %1 = vector.load %arg4[%c0_1, %c0_2] : memref<1x8xf32, #tpu.memory_space<vmem>>, vector<1x8xf32>
    %cst = arith.constant 0.000000e+00 : f32
    %2 = vector.broadcast %cst : f32 to vector<34x128xf32>
    %c0_3 = arith.constant 0 : index
    %c0_4 = arith.constant 0 : index
    %3 = vector.load %arg0[%c0_3, %c0_4] : memref<36x64xbf16, #tpu.memory_space<vmem>>, vector<34x64xbf16>
    %c0_5 = arith.constant 0 : index
    %c0_6 = arith.constant 0 : index
    %c0_7 = arith.constant 0 : index
    %4 = vector.load %arg1[%c0_5, %c0_6, %c0_7] : memref<3x64x128xbf16, #tpu.memory_space<vmem>>, vector<1x64x128xbf16>
    %5 = vector.shape_cast %4 : vector<1x64x128xbf16> to vector<64x128xbf16>
    %cst_8 = arith.constant dense<0.000000e+00> : vector<34x128xf32>
    %6 = tpu.matmul %3, %5, %cst_8 {dimension_numbers = #tpu.dot_dimension_numbers<[1], [0], [0], [1], [0, 0, 1, 1], [], []>} : vector<34x64xbf16>, vector<64x128xbf16>, vector<34x128xf32> -> vector<34x128xf32>
    %7 = arith.addf %2, %6 : vector<34x128xf32>
    %c1 = arith.constant 1 : index
    %c0_9 = arith.constant 0 : index
    %8 = vector.load %arg0[%c1, %c0_9] : memref<36x64xbf16, #tpu.memory_space<vmem>>, vector<34x64xbf16>
    %c1_10 = arith.constant 1 : index
    %c0_11 = arith.constant 0 : index
    %c0_12 = arith.constant 0 : index
    %9 = vector.load %arg1[%c1_10, %c0_11, %c0_12] : memref<3x64x128xbf16, #tpu.memory_space<vmem>>, vector<1x64x128xbf16>
    %10 = vector.shape_cast %9 : vector<1x64x128xbf16> to vector<64x128xbf16>
    %cst_13 = arith.constant dense<0.000000e+00> : vector<34x128xf32>
    %11 = tpu.matmul %8, %10, %cst_13 {dimension_numbers = #tpu.dot_dimension_numbers<[1], [0], [0], [1], [0, 0, 1, 1], [], []>} : vector<34x64xbf16>, vector<64x128xbf16>, vector<34x128xf32> -> vector<34x128xf32>
    %12 = arith.addf %7, %11 : vector<34x128xf32>
    %c2 = arith.constant 2 : index
    %c0_14 = arith.constant 0 : index
    %13 = vector.load %arg0[%c2, %c0_14] : memref<36x64xbf16, #tpu.memory_space<vmem>>, vector<34x64xbf16>
    %c2_15 = arith.constant 2 : index
    %c0_16 = arith.constant 0 : index
    %c0_17 = arith.constant 0 : index
    %14 = vector.load %arg1[%c2_15, %c0_16, %c0_17] : memref<3x64x128xbf16, #tpu.memory_space<vmem>>, vector<1x64x128xbf16>
    %15 = vector.shape_cast %14 : vector<1x64x128xbf16> to vector<64x128xbf16>
    %cst_18 = arith.constant dense<0.000000e+00> : vector<34x128xf32>
    %16 = tpu.matmul %13, %15, %cst_18 {dimension_numbers = #tpu.dot_dimension_numbers<[1], [0], [0], [1], [0, 0, 1, 1], [], []>} : vector<34x64xbf16>, vector<64x128xbf16>, vector<34x128xf32> -> vector<34x128xf32>
    %17 = arith.addf %12, %16 : vector<34x128xf32>
    %18 = tpu.iota {dimensions = array<i32: 0>} : vector<34x1xi32>
    %c16_i32 = arith.constant 16 : i32
    %c0_i32 = arith.constant 0 : i32
    %19 = arith.cmpi eq, %c16_i32, %c0_i32 : i32
    %c1_i32 = arith.constant 1 : i32
    %20 = arith.select %19, %c1_i32, %c16_i32 : i32
    %21 = vector.broadcast %20 : i32 to vector<34x1xi32>
    %22 = arith.remsi %18, %21 : vector<34x1xi32>
    %c0_i32_19 = arith.constant 0 : i32
    %23 = vector.broadcast %c0_i32_19 : i32 to vector<34x1xi32>
    %24 = arith.cmpi ne, %22, %23 : vector<34x1xi32>
    %c0_i32_20 = arith.constant 0 : i32
    %25 = vector.broadcast %c0_i32_20 : i32 to vector<34x1xi32>
    %26 = arith.cmpi slt, %22, %25 : vector<34x1xi32>
    %c0_i32_21 = arith.constant 0 : i32
    %27 = arith.cmpi slt, %20, %c0_i32_21 : i32
    %28 = vector.broadcast %27 : i1 to vector<34x1xi1>
    %29 = vector.broadcast %28 : vector<34x1xi1> to vector<34x1xi1>
    %30 = arith.xori %26, %29 : vector<34x1xi1>
    %31 = arith.andi %30, %24 : vector<34x1xi1>
    %32 = vector.broadcast %20 : i32 to vector<34x1xi32>
    %33 = arith.addi %22, %32 : vector<34x1xi32>
    %34 = arith.select %31, %33, %22 : vector<34x1xi1>, vector<34x1xi32>
    %c14_i32 = arith.constant 14 : i32
    %35 = vector.broadcast %c14_i32 : i32 to vector<34x1xi32>
    %36 = arith.cmpi slt, %34, %35 : vector<34x1xi32>
    %c32_i32 = arith.constant 32 : i32
    %37 = vector.broadcast %c32_i32 : i32 to vector<34x1xi32>
    %38 = arith.cmpi slt, %18, %37 : vector<34x1xi32>
    %39 = arith.andi %36, %38 : vector<34x1xi1>
    %cst_22 = arith.constant 1.000000e+00 : f32
    %cst_23 = arith.constant 0.000000e+00 : f32
    %40 = vector.broadcast %cst_22 : f32 to vector<34x1xf32>
    %41 = vector.broadcast %cst_23 : f32 to vector<34x1xf32>
    %42 = arith.select %39, %40, %41 : vector<34x1xi1>, vector<34x1xf32>
    %43 = tpu.iota {dimensions = array<i32: 0>} : vector<128x8xi32>
    %44 = tpu.iota {dimensions = array<i32: 1>} : vector<128x8xi32>
    %c8_i32 = arith.constant 8 : i32
    %c0_i32_24 = arith.constant 0 : i32
    %45 = arith.cmpi eq, %c8_i32, %c0_i32_24 : i32
    %c1_i32_25 = arith.constant 1 : i32
    %46 = arith.select %45, %c1_i32_25, %c8_i32 : i32
    %47 = vector.broadcast %46 : i32 to vector<128x8xi32>
    %48 = arith.remsi %43, %47 : vector<128x8xi32>
    %c0_i32_26 = arith.constant 0 : i32
    %49 = vector.broadcast %c0_i32_26 : i32 to vector<128x8xi32>
    %50 = arith.cmpi ne, %48, %49 : vector<128x8xi32>
    %c0_i32_27 = arith.constant 0 : i32
    %51 = vector.broadcast %c0_i32_27 : i32 to vector<128x8xi32>
    %52 = arith.cmpi slt, %48, %51 : vector<128x8xi32>
    %c0_i32_28 = arith.constant 0 : i32
    %53 = arith.cmpi slt, %46, %c0_i32_28 : i32
    %54 = vector.broadcast %53 : i1 to vector<128x8xi1>
    %55 = vector.broadcast %54 : vector<128x8xi1> to vector<128x8xi1>
    %56 = arith.xori %52, %55 : vector<128x8xi1>
    %57 = arith.andi %56, %50 : vector<128x8xi1>
    %58 = vector.broadcast %46 : i32 to vector<128x8xi32>
    %59 = arith.addi %48, %58 : vector<128x8xi32>
    %60 = arith.select %57, %59, %48 : vector<128x8xi1>, vector<128x8xi32>
    %61 = arith.cmpi eq, %60, %44 : vector<128x8xi32>
    %c112_i32 = arith.constant 112 : i32
    %62 = vector.broadcast %c112_i32 : i32 to vector<128x8xi32>
    %63 = arith.cmpi slt, %43, %62 : vector<128x8xi32>
    %64 = arith.andi %61, %63 : vector<128x8xi1>
    %cst_29 = arith.constant 1.000000e+00 : f32
    %cst_30 = arith.constant 0.000000e+00 : f32
    %65 = vector.broadcast %cst_29 : f32 to vector<128x8xf32>
    %66 = vector.broadcast %cst_30 : f32 to vector<128x8xf32>
    %67 = arith.select %64, %65, %66 : vector<128x8xi1>, vector<128x8xf32>
    %68 = tpu.iota {dimensions = array<i32: 0>} : vector<8x128xi32>
    %69 = tpu.iota {dimensions = array<i32: 1>} : vector<8x128xi32>
    %c8_i32_31 = arith.constant 8 : i32
    %c0_i32_32 = arith.constant 0 : i32
    %70 = arith.cmpi eq, %c8_i32_31, %c0_i32_32 : i32
    %c1_i32_33 = arith.constant 1 : i32
    %71 = arith.select %70, %c1_i32_33, %c8_i32_31 : i32
    %72 = vector.broadcast %71 : i32 to vector<8x128xi32>
    %73 = arith.remsi %69, %72 : vector<8x128xi32>
    %c0_i32_34 = arith.constant 0 : i32
    %74 = vector.broadcast %c0_i32_34 : i32 to vector<8x128xi32>
    %75 = arith.cmpi ne, %73, %74 : vector<8x128xi32>
    %c0_i32_35 = arith.constant 0 : i32
    %76 = vector.broadcast %c0_i32_35 : i32 to vector<8x128xi32>
    %77 = arith.cmpi slt, %73, %76 : vector<8x128xi32>
    %c0_i32_36 = arith.constant 0 : i32
    %78 = arith.cmpi slt, %71, %c0_i32_36 : i32
    %79 = vector.broadcast %78 : i1 to vector<8x128xi1>
    %80 = vector.broadcast %79 : vector<8x128xi1> to vector<8x128xi1>
    %81 = arith.xori %77, %80 : vector<8x128xi1>
    %82 = arith.andi %81, %75 : vector<8x128xi1>
    %83 = vector.broadcast %71 : i32 to vector<8x128xi32>
    %84 = arith.addi %73, %83 : vector<8x128xi32>
    %85 = arith.select %82, %84, %73 : vector<8x128xi1>, vector<8x128xi32>
    %86 = arith.cmpi eq, %85, %68 : vector<8x128xi32>
    %c112_i32_37 = arith.constant 112 : i32
    %87 = vector.broadcast %c112_i32_37 : i32 to vector<8x128xi32>
    %88 = arith.cmpi slt, %69, %87 : vector<8x128xi32>
    %89 = arith.andi %86, %88 : vector<8x128xi1>
    %cst_38 = arith.constant 1.000000e+00 : f32
    %cst_39 = arith.constant 0.000000e+00 : f32
    %90 = vector.broadcast %cst_38 : f32 to vector<8x128xf32>
    %91 = vector.broadcast %cst_39 : f32 to vector<8x128xf32>
    %92 = arith.select %89, %90, %91 : vector<8x128xi1>, vector<8x128xf32>
    %93 = vector.broadcast %42 : vector<34x1xf32> to vector<34x128xf32>
    %94 = arith.mulf %17, %93 : vector<34x128xf32>
    %cst_40 = arith.constant dense<0.000000e+00> : vector<128xf32>
    %95 = vector.multi_reduction <add>, %94, %cst_40 [0] : vector<34x128xf32> to vector<128xf32>
    %96 = vector.shape_cast %95 : vector<128xf32> to vector<1x128xf32>
    %97 = arith.mulf %94, %17 : vector<34x128xf32>
    %cst_41 = arith.constant dense<0.000000e+00> : vector<128xf32>
    %98 = vector.multi_reduction <add>, %97, %cst_41 [0] : vector<34x128xf32> to vector<128xf32>
    %99 = vector.shape_cast %98 : vector<128xf32> to vector<1x128xf32>
    %100 = tpu.concatenate %96, %99 in 0 : vector<1x128xf32>, vector<1x128xf32> -> vector<2x128xf32>
    %cst_42 = arith.constant dense<0.000000e+00> : vector<2x8xf32>
    %101 = tpu.matmul %100, %67, %cst_42 {dimension_numbers = #tpu.dot_dimension_numbers<[1], [0], [0], [1], [0, 0, 1, 1], [], []>} : vector<2x128xf32>, vector<128x8xf32>, vector<2x8xf32> -> vector<2x8xf32>
    %cst_43 = arith.constant 0.00255102036 : f32
    %102 = vector.broadcast %cst_43 : f32 to vector<2x8xf32>
    %103 = arith.mulf %101, %102 : vector<2x8xf32>
    %104 = vector.extract_strided_slice %103 {offsets = [0, 0], sizes = [1, 8], strides = [1, 1]} : vector<2x8xf32> to vector<1x8xf32>
    %105 = vector.extract_strided_slice %103 {offsets = [1, 0], sizes = [1, 8], strides = [1, 1]} : vector<2x8xf32> to vector<1x8xf32>
    %106 = arith.mulf %104, %104 : vector<1x8xf32>
    %107 = arith.subf %105, %106 : vector<1x8xf32>
    %cst_44 = arith.constant 9.99999974E-6 : f32
    %108 = vector.broadcast %cst_44 : f32 to vector<1x8xf32>
    %109 = arith.addf %107, %108 : vector<1x8xf32>
    %110 = math.rsqrt %109 : vector<1x8xf32>
    %111 = arith.mulf %110, %0 : vector<1x8xf32>
    %112 = arith.mulf %104, %111 : vector<1x8xf32>
    %113 = arith.subf %1, %112 : vector<1x8xf32>
    %114 = tpu.concatenate %111, %113 in 0 : vector<1x8xf32>, vector<1x8xf32> -> vector<2x8xf32>
    %cst_45 = arith.constant dense<0.000000e+00> : vector<2x128xf32>
    %115 = tpu.matmul %114, %92, %cst_45 {dimension_numbers = #tpu.dot_dimension_numbers<[1], [0], [0], [1], [0, 0, 1, 1], [], []>} : vector<2x8xf32>, vector<8x128xf32>, vector<2x128xf32> -> vector<2x128xf32>
    %116 = vector.extract_strided_slice %115 {offsets = [0, 0], sizes = [1, 128], strides = [1, 1]} : vector<2x128xf32> to vector<1x128xf32>
    %117 = vector.broadcast %116 : vector<1x128xf32> to vector<34x128xf32>
    %118 = arith.mulf %17, %117 : vector<34x128xf32>
    %119 = vector.extract_strided_slice %115 {offsets = [1, 0], sizes = [1, 128], strides = [1, 1]} : vector<2x128xf32> to vector<1x128xf32>
    %120 = vector.broadcast %119 : vector<1x128xf32> to vector<34x128xf32>
    %121 = arith.addf %118, %120 : vector<34x128xf32>
    %cst_46 = arith.constant 0.000000e+00 : f32
    %122 = vector.broadcast %cst_46 : f32 to vector<34x128xf32>
    %123 = arith.maximumf %121, %122 : vector<34x128xf32>
    %124 = arith.truncf %123 : vector<34x128xf32> to vector<34x128xbf16>
    %c0_47 = arith.constant 0 : index
    %c0_48 = arith.constant 0 : index
    %125 = vector.load %arg6[%c0_47, %c0_48] : memref<34x128xbf16, #tpu.memory_space<vmem>>, vector<34x128xbf16>
    tpu.vector_store %arg6[%c0_47, %c0_48], %124 {strides = array<i32>} : memref<34x128xbf16, #tpu.memory_space<vmem>>, vector<34x128xbf16>,
    %cst_49 = arith.constant 0.000000e+00 : f32
    %126 = vector.broadcast %cst_49 : f32 to vector<32x128xf32>
    %c0_50 = arith.constant 0 : index
    %c0_51 = arith.constant 0 : index
    %127 = vector.load %arg6[%c0_50, %c0_51] : memref<34x128xbf16, #tpu.memory_space<vmem>>, vector<32x128xbf16>
    %c0_52 = arith.constant 0 : index
    %c0_53 = arith.constant 0 : index
    %c0_54 = arith.constant 0 : index
    %128 = vector.load %arg2[%c0_52, %c0_53, %c0_54] : memref<3x128x128xbf16, #tpu.memory_space<vmem>>, vector<1x128x128xbf16>
    %129 = vector.shape_cast %128 : vector<1x128x128xbf16> to vector<128x128xbf16>
    %cst_55 = arith.constant dense<0.000000e+00> : vector<32x128xf32>
    %130 = tpu.matmul %127, %129, %cst_55 {dimension_numbers = #tpu.dot_dimension_numbers<[1], [0], [0], [1], [0, 0, 1, 1], [], []>} : vector<32x128xbf16>, vector<128x128xbf16>, vector<32x128xf32> -> vector<32x128xf32>
    %131 = arith.addf %126, %130 : vector<32x128xf32>
    %c1_56 = arith.constant 1 : index
    %c0_57 = arith.constant 0 : index
    %132 = vector.load %arg6[%c1_56, %c0_57] : memref<34x128xbf16, #tpu.memory_space<vmem>>, vector<32x128xbf16>
    %c1_58 = arith.constant 1 : index
    %c0_59 = arith.constant 0 : index
    %c0_60 = arith.constant 0 : index
    %133 = vector.load %arg2[%c1_58, %c0_59, %c0_60] : memref<3x128x128xbf16, #tpu.memory_space<vmem>>, vector<1x128x128xbf16>
    %134 = vector.shape_cast %133 : vector<1x128x128xbf16> to vector<128x128xbf16>
    %cst_61 = arith.constant dense<0.000000e+00> : vector<32x128xf32>
    %135 = tpu.matmul %132, %134, %cst_61 {dimension_numbers = #tpu.dot_dimension_numbers<[1], [0], [0], [1], [0, 0, 1, 1], [], []>} : vector<32x128xbf16>, vector<128x128xbf16>, vector<32x128xf32> -> vector<32x128xf32>
    %136 = arith.addf %131, %135 : vector<32x128xf32>
    %c2_62 = arith.constant 2 : index
    %c0_63 = arith.constant 0 : index
    %137 = vector.load %arg6[%c2_62, %c0_63] : memref<34x128xbf16, #tpu.memory_space<vmem>>, vector<32x128xbf16>
    %c2_64 = arith.constant 2 : index
    %c0_65 = arith.constant 0 : index
    %c0_66 = arith.constant 0 : index
    %138 = vector.load %arg2[%c2_64, %c0_65, %c0_66] : memref<3x128x128xbf16, #tpu.memory_space<vmem>>, vector<1x128x128xbf16>
    %139 = vector.shape_cast %138 : vector<1x128x128xbf16> to vector<128x128xbf16>
    %cst_67 = arith.constant dense<0.000000e+00> : vector<32x128xf32>
    %140 = tpu.matmul %137, %139, %cst_67 {dimension_numbers = #tpu.dot_dimension_numbers<[1], [0], [0], [1], [0, 0, 1, 1], [], []>} : vector<32x128xbf16>, vector<128x128xbf16>, vector<32x128xf32> -> vector<32x128xf32>
    %141 = arith.addf %136, %140 : vector<32x128xf32>
    %142 = tpu.iota {dimensions = array<i32: 0>} : vector<32x1xi32>
    %c16_i32_68 = arith.constant 16 : i32
    %c0_i32_69 = arith.constant 0 : i32
    %143 = arith.cmpi eq, %c16_i32_68, %c0_i32_69 : i32
    %c1_i32_70 = arith.constant 1 : i32
    %144 = arith.select %143, %c1_i32_70, %c16_i32_68 : i32
    %145 = vector.broadcast %144 : i32 to vector<32x1xi32>
    %146 = arith.remsi %142, %145 : vector<32x1xi32>
    %c0_i32_71 = arith.constant 0 : i32
    %147 = vector.broadcast %c0_i32_71 : i32 to vector<32x1xi32>
    %148 = arith.cmpi ne, %146, %147 : vector<32x1xi32>
    %c0_i32_72 = arith.constant 0 : i32
    %149 = vector.broadcast %c0_i32_72 : i32 to vector<32x1xi32>
    %150 = arith.cmpi slt, %146, %149 : vector<32x1xi32>
    %c0_i32_73 = arith.constant 0 : i32
    %151 = arith.cmpi slt, %144, %c0_i32_73 : i32
    %152 = vector.broadcast %151 : i1 to vector<32x1xi1>
    %153 = vector.broadcast %152 : vector<32x1xi1> to vector<32x1xi1>
    %154 = arith.xori %150, %153 : vector<32x1xi1>
    %155 = arith.andi %154, %148 : vector<32x1xi1>
    %156 = vector.broadcast %144 : i32 to vector<32x1xi32>
    %157 = arith.addi %146, %156 : vector<32x1xi32>
    %158 = arith.select %155, %157, %146 : vector<32x1xi1>, vector<32x1xi32>
    %c12_i32 = arith.constant 12 : i32
    %159 = vector.broadcast %c12_i32 : i32 to vector<32x1xi32>
    %160 = arith.cmpi slt, %158, %159 : vector<32x1xi32>
    %c32_i32_74 = arith.constant 32 : i32
    %161 = vector.broadcast %c32_i32_74 : i32 to vector<32x1xi32>
    %162 = arith.cmpi slt, %142, %161 : vector<32x1xi32>
    %163 = arith.andi %160, %162 : vector<32x1xi1>
    %cst_75 = arith.constant 1.000000e+00 : f32
    %cst_76 = arith.constant 0.000000e+00 : f32
    %164 = vector.broadcast %cst_75 : f32 to vector<32x1xf32>
    %165 = vector.broadcast %cst_76 : f32 to vector<32x1xf32>
    %166 = arith.select %163, %164, %165 : vector<32x1xi1>, vector<32x1xf32>
    %167 = tpu.iota {dimensions = array<i32: 0>} : vector<128x8xi32>
    %168 = tpu.iota {dimensions = array<i32: 1>} : vector<128x8xi32>
    %c8_i32_77 = arith.constant 8 : i32
    %c0_i32_78 = arith.constant 0 : i32
    %169 = arith.cmpi eq, %c8_i32_77, %c0_i32_78 : i32
    %c1_i32_79 = arith.constant 1 : i32
    %170 = arith.select %169, %c1_i32_79, %c8_i32_77 : i32
    %171 = vector.broadcast %170 : i32 to vector<128x8xi32>
    %172 = arith.remsi %167, %171 : vector<128x8xi32>
    %c0_i32_80 = arith.constant 0 : i32
    %173 = vector.broadcast %c0_i32_80 : i32 to vector<128x8xi32>
    %174 = arith.cmpi ne, %172, %173 : vector<128x8xi32>
    %c0_i32_81 = arith.constant 0 : i32
    %175 = vector.broadcast %c0_i32_81 : i32 to vector<128x8xi32>
    %176 = arith.cmpi slt, %172, %175 : vector<128x8xi32>
    %c0_i32_82 = arith.constant 0 : i32
    %177 = arith.cmpi slt, %170, %c0_i32_82 : i32
    %178 = vector.broadcast %177 : i1 to vector<128x8xi1>
    %179 = vector.broadcast %178 : vector<128x8xi1> to vector<128x8xi1>
    %180 = arith.xori %176, %179 : vector<128x8xi1>
    %181 = arith.andi %180, %174 : vector<128x8xi1>
    %182 = vector.broadcast %170 : i32 to vector<128x8xi32>
    %183 = arith.addi %172, %182 : vector<128x8xi32>
    %184 = arith.select %181, %183, %172 : vector<128x8xi1>, vector<128x8xi32>
    %185 = arith.cmpi eq, %184, %168 : vector<128x8xi32>
    %c96_i32 = arith.constant 96 : i32
    %186 = vector.broadcast %c96_i32 : i32 to vector<128x8xi32>
    %187 = arith.cmpi slt, %167, %186 : vector<128x8xi32>
    %188 = arith.andi %185, %187 : vector<128x8xi1>
    %cst_83 = arith.constant 1.000000e+00 : f32
    %cst_84 = arith.constant 0.000000e+00 : f32
    %189 = vector.broadcast %cst_83 : f32 to vector<128x8xf32>
    %190 = vector.broadcast %cst_84 : f32 to vector<128x8xf32>
    %191 = arith.select %188, %189, %190 : vector<128x8xi1>, vector<128x8xf32>
    %192 = tpu.iota {dimensions = array<i32: 0>} : vector<8x128xi32>
    %193 = tpu.iota {dimensions = array<i32: 1>} : vector<8x128xi32>
    %c8_i32_85 = arith.constant 8 : i32
    %c0_i32_86 = arith.constant 0 : i32
    %194 = arith.cmpi eq, %c8_i32_85, %c0_i32_86 : i32
    %c1_i32_87 = arith.constant 1 : i32
    %195 = arith.select %194, %c1_i32_87, %c8_i32_85 : i32
    %196 = vector.broadcast %195 : i32 to vector<8x128xi32>
    %197 = arith.remsi %193, %196 : vector<8x128xi32>
    %c0_i32_88 = arith.constant 0 : i32
    %198 = vector.broadcast %c0_i32_88 : i32 to vector<8x128xi32>
    %199 = arith.cmpi ne, %197, %198 : vector<8x128xi32>
    %c0_i32_89 = arith.constant 0 : i32
    %200 = vector.broadcast %c0_i32_89 : i32 to vector<8x128xi32>
    %201 = arith.cmpi slt, %197, %200 : vector<8x128xi32>
    %c0_i32_90 = arith.constant 0 : i32
    %202 = arith.cmpi slt, %195, %c0_i32_90 : i32
    %203 = vector.broadcast %202 : i1 to vector<8x128xi1>
    %204 = vector.broadcast %203 : vector<8x128xi1> to vector<8x128xi1>
    %205 = arith.xori %201, %204 : vector<8x128xi1>
    %206 = arith.andi %205, %199 : vector<8x128xi1>
    %207 = vector.broadcast %195 : i32 to vector<8x128xi32>
    %208 = arith.addi %197, %207 : vector<8x128xi32>
    %209 = arith.select %206, %208, %197 : vector<8x128xi1>, vector<8x128xi32>
    %210 = arith.cmpi eq, %209, %192 : vector<8x128xi32>
    %c96_i32_91 = arith.constant 96 : i32
    %211 = vector.broadcast %c96_i32_91 : i32 to vector<8x128xi32>
    %212 = arith.cmpi slt, %193, %211 : vector<8x128xi32>
    %213 = arith.andi %210, %212 : vector<8x128xi1>
    %cst_92 = arith.constant 1.000000e+00 : f32
    %cst_93 = arith.constant 0.000000e+00 : f32
    %214 = vector.broadcast %cst_92 : f32 to vector<8x128xf32>
    %215 = vector.broadcast %cst_93 : f32 to vector<8x128xf32>
    %216 = arith.select %213, %214, %215 : vector<8x128xi1>, vector<8x128xf32>
    %217 = vector.broadcast %166 : vector<32x1xf32> to vector<32x128xf32>
    %218 = arith.mulf %141, %217 : vector<32x128xf32>
    %cst_94 = arith.constant dense<0.000000e+00> : vector<128xf32>
    %219 = vector.multi_reduction <add>, %218, %cst_94 [0] : vector<32x128xf32> to vector<128xf32>
    %220 = vector.shape_cast %219 : vector<128xf32> to vector<1x128xf32>
    %221 = arith.mulf %218, %141 : vector<32x128xf32>
    %cst_95 = arith.constant dense<0.000000e+00> : vector<128xf32>
    %222 = vector.multi_reduction <add>, %221, %cst_95 [0] : vector<32x128xf32> to vector<128xf32>
    %223 = vector.shape_cast %222 : vector<128xf32> to vector<1x128xf32>
    %224 = tpu.concatenate %220, %223 in 0 : vector<1x128xf32>, vector<1x128xf32> -> vector<2x128xf32>
    %cst_96 = arith.constant dense<0.000000e+00> : vector<2x8xf32>
    %225 = tpu.matmul %224, %191, %cst_96 {dimension_numbers = #tpu.dot_dimension_numbers<[1], [0], [0], [1], [0, 0, 1, 1], [], []>} : vector<2x128xf32>, vector<128x8xf32>, vector<2x8xf32> -> vector<2x8xf32>
    %cst_97 = arith.constant 0.00347222225 : f32
    %226 = vector.broadcast %cst_97 : f32 to vector<2x8xf32>
    %227 = arith.mulf %225, %226 : vector<2x8xf32>
    %228 = vector.extract_strided_slice %227 {offsets = [0, 0], sizes = [1, 8], strides = [1, 1]} : vector<2x8xf32> to vector<1x8xf32>
    %229 = vector.extract_strided_slice %227 {offsets = [1, 0], sizes = [1, 8], strides = [1, 1]} : vector<2x8xf32> to vector<1x8xf32>
    %230 = arith.mulf %228, %228 : vector<1x8xf32>
    %231 = arith.subf %229, %230 : vector<1x8xf32>
    %cst_98 = arith.constant 9.99999974E-6 : f32
    %232 = vector.broadcast %cst_98 : f32 to vector<1x8xf32>
    %233 = arith.addf %231, %232 : vector<1x8xf32>
    %234 = math.rsqrt %233 : vector<1x8xf32>
    %235 = arith.mulf %234, %0 : vector<1x8xf32>
    %236 = arith.mulf %228, %235 : vector<1x8xf32>
    %237 = arith.subf %1, %236 : vector<1x8xf32>
    %238 = tpu.concatenate %235, %237 in 0 : vector<1x8xf32>, vector<1x8xf32> -> vector<2x8xf32>
    %cst_99 = arith.constant dense<0.000000e+00> : vector<2x128xf32>
    %239 = tpu.matmul %238, %216, %cst_99 {dimension_numbers = #tpu.dot_dimension_numbers<[1], [0], [0], [1], [0, 0, 1, 1], [], []>} : vector<2x8xf32>, vector<8x128xf32>, vector<2x128xf32> -> vector<2x128xf32>
    %240 = vector.extract_strided_slice %239 {offsets = [0, 0], sizes = [1, 128], strides = [1, 1]} : vector<2x128xf32> to vector<1x128xf32>
    %241 = vector.broadcast %240 : vector<1x128xf32> to vector<32x128xf32>
    %242 = arith.mulf %141, %241 : vector<32x128xf32>
    %243 = vector.extract_strided_slice %239 {offsets = [1, 0], sizes = [1, 128], strides = [1, 1]} : vector<2x128xf32> to vector<1x128xf32>
    %244 = vector.broadcast %243 : vector<1x128xf32> to vector<32x128xf32>
    %245 = arith.addf %242, %244 : vector<32x128xf32>
    %cst_100 = arith.constant 0.000000e+00 : f32
    %246 = vector.broadcast %cst_100 : f32 to vector<32x128xf32>
    %247 = arith.maximumf %245, %246 : vector<32x128xf32>
    %c0_101 = arith.constant 0 : index
    %c0_102 = arith.constant 0 : index
    %248 = vector.load %arg5[%c0_101, %c0_102] : memref<32x128xf32, #tpu.memory_space<vmem>>, vector<32x128xf32>
    tpu.vector_store %arg5[%c0_101, %c0_102], %247 {strides = array<i32>} : memref<32x128xf32, #tpu.memory_space<vmem>>, vector<32x128xf32>,
    return
  }
}

</mosaic_0001>

<llo_original>
// kernel: block_forward.1
$region0: #{block_forward.1}
  #allocation0 [shape = 'u32[]', space=smem, size = 0x4, offset = 0x4, fixed_abs, tag = 'smem constant byte address 0x4 - core index']
  #allocation1 [shape = 'u32[144,128]{1,0:T(1,128)}', space=vmem, size = 0x12000, scoped, tag = 'internal scratch']
  #allocation2 [shape = 'bf16[34,128]{1,0:T(8,128)(2,1)}', space=vmem, size = 0x2800, scoped, tag = 'scratch operand']
  %s0 = inlined_call_operand.vmem [shape: bf16[36,64], index: 0, kind: input, shape index: {}]
  %s1 = inlined_call_operand.vmem [shape: bf16[3,64,128], index: 1, kind: input, shape index: {}]
  %s2 = inlined_call_operand.vmem [shape: bf16[3,128,128], index: 2, kind: input, shape index: {}]
  %s3 = inlined_call_operand.vmem [shape: f32[1,8], index: 3, kind: input, shape index: {}]
  %s4 = inlined_call_operand.vmem [shape: f32[1,8], index: 4, kind: input, shape index: {}]
  %s5 = inlined_call_operand.vmem [shape: f32[32,128], index: 5, kind: output, shape index: {}]
  %s6 = sld [smem:[#allocation0]]
  $region30: #{block_forward.1} parent=0
    _
  %s8 = ssub.s32 1, %s6
  %s9 = scalar_select 0, %s8, %s6
  // Predicated region
  $region2: #{block_forward.1} parent=0 // pred_check
    _
  $region3: #{block_forward.1} parent=0 // pred_check_branch
    %11 = sbr.rel (0) target = $region5
  $region4: #{block_forward.1} parent=0 // pred_region
    _
  $region5: #{block_forward.1} parent=0 // pred_fallthru
    _
  // Predicated region
  $region6: #{block_forward.1} parent=0 // pred_check
    _
  $region7: #{block_forward.1} parent=0 // pred_check_branch
    %13 = sbr.rel (0) target = $region9
  $region8: #{block_forward.1} parent=0 // pred_region
    _
  $region9: #{block_forward.1} parent=0 // pred_fallthru
    _
  // Predicated region
  $region10: #{block_forward.1} parent=0 // pred_check
    _
  $region11: #{block_forward.1} parent=0 // pred_check_branch
    %15 = sbr.rel (0) target = $region13
  $region12: #{block_forward.1} parent=0 // pred_region
    _
  $region13: #{block_forward.1} parent=0 // pred_fallthru
    _
  // Predicated region
  $region14: #{block_forward.1} parent=0 // pred_check
    _
  $region15: #{block_forward.1} parent=0 // pred_check_branch
    %17 = sbr.rel (0) target = $region17
  $region16: #{block_forward.1} parent=0 // pred_region
    _
  $region17: #{block_forward.1} parent=0 // pred_fallthru
    _
  // Predicated region
  $region18: #{block_forward.1} parent=0 // pred_check
    _
  $region19: #{block_forward.1} parent=0 // pred_check_branch
    %19 = sbr.rel (0) target = $region21
  $region20: #{block_forward.1} parent=0 // pred_region
    _
  $region21: #{block_forward.1} parent=0 // pred_fallthru
    _
  %v21 = vld [vmem:[%s3] sm:$0x1]
  %v22 = vld [vmem:[%s4] sm:$0x1]
  %v23 = vld [vmem:[%s0] sm:$0xf]
  %v24 = vld [vmem:[%s0 + $0x4] sm:$0xf]
  %v25 = vld [vmem:[%s0 + $0x8] sm:$0xf]
  %v26 = vld [vmem:[%s0 + $0xc] sm:$0xf]
  %v27 = vld [vmem:[%s0 + $0x10] sm:$0x1]
  %v28 = vld [vmem:[%s1] sm:$0xf]
  %v29 = vld [vmem:[%s1 + $0x4] sm:$0xf]
  %v30 = vld [vmem:[%s1 + $0x8] sm:$0xf]
  %v31 = vld [vmem:[%s1 + $0xc] sm:$0xf]
  %v32 = vld [vmem:[%s1 + $0x10] sm:$0xf]
  %v33 = vld [vmem:[%s1 + $0x14] sm:$0xf]
  %v34 = vld [vmem:[%s1 + $0x18] sm:$0xf]
  %v35 = vld [vmem:[%s1 + $0x1c] sm:$0xf]
  %v36 = vld [vmem:[%s0 + $0x10] sm:$0x3]
  %s37 = scalar_lea.vmem %s1, 32
  %v38 = vld [vmem:[%s37] sm:$0xf]
  %v39 = vld [vmem:[%s37 + $0x4] sm:$0xf]
  %v40 = vld [vmem:[%s37 + $0x8] sm:$0xf]
  %v41 = vld [vmem:[%s37 + $0xc] sm:$0xf]
  %v42 = vld [vmem:[%s37 + $0x10] sm:$0xf]
  %v43 = vld [vmem:[%s37 + $0x14] sm:$0xf]
  %v44 = vld [vmem:[%s37 + $0x18] sm:$0xf]
  %v45 = vld [vmem:[%s37 + $0x1c] sm:$0xf]
  %v51 = vunpack.c.l.b16 %v23
  %v52 = vunpack.c.l.b16 %v24
  %v53 = vunpack.c.l.b16 %v25
  %v54 = vunpack.c.l.b16 %v26
  %v55 = vunpack.c.l.b16 %v36
  %v56 = vpack.c.b16 %v52, %v51
  %v57 = vpack.c.b16 %v54, %v53
  %v58 = vpack.c.b16 %v55, %v55
  %vm59 = vsmask.f32 7424
  %v61 = vshrl.u32 %v56, 16
  %v63 = vshll.u32 %v56, 16
  %v65 = vrot.slane %v63, 1
  %v66 = vor.u32 %v61, %v65
  %v68 = vshll.u32 %v57, 16
  %v70 = vrot.slane %v68, 1
  %v71 = vsel %vm59, %v66, %v70
  %v72 = vshrl.u32 %v57, 16
  %v74 = vor.u32 %v72, %v70
  %v76 = vshll.u32 %v58, 16
  %v78 = vrot.slane %v76, 1
  %v79 = vsel %vm59, %v74, %v78
  %v80 = vshrl.u32 %v58, 16
  %v82 = vor.u32 %v80, %v78
  %v91 = vunpack.c.l.b16 %v38
  %v92 = vunpack.c.l.b16 %v39
  %v93 = vunpack.c.l.b16 %v40
  %v94 = vunpack.c.l.b16 %v41
  %v95 = vunpack.c.l.b16 %v42
  %v96 = vunpack.c.l.b16 %v43
  %v97 = vunpack.c.l.b16 %v44
  %v98 = vunpack.c.l.b16 %v45
  %v99 = vpack.c.b16 %v92, %v91
  %v100 = vpack.c.b16 %v94, %v93
  %v101 = vpack.c.b16 %v96, %v95
  %v102 = vpack.c.b16 %v98, %v97
  %vm107 = vcmask 523264
  %v109 = vsel %vm107, %v71, 0
  %v112 = vsel %vm107, %v79, 0
  %v115 = vsel %vm107, %v82, 0
  %117 = vmatprep.subr.bf16.mxu0 0
  %118 = vmatpush1.bf16.msra.mxu0 0
  %119 = vmatprep.subr.bf16.mxu0 0
  %120 = vmatpush1.bf16.msra.mxu0 0
  %121 = vmatprep.subr.bf16.mxu0 0
  %122 = vmatpush1.bf16.msra.mxu0 0
  %123 = vmatprep.subr.bf16.mxu0 0
  %124 = vmatpush1.bf16.msra.mxu0 0
  %125 = vmatprep.subr.bf16.mxu0 0
  %126 = vmatpush1.bf16.msra.mxu0 %v102
  %127 = vmatprep.subr.bf16.mxu0 0
  %128 = vmatpush1.bf16.msra.mxu0 %v101
  %129 = vmatprep.subr.bf16.mxu0 0
  %130 = vmatpush1.bf16.msra.mxu0 %v100
  %131 = vmatprep.subr.bf16.mxu0 0
  %132 = vmatpush1.bf16.msra.mxu0 %v99
  %133 = vmatprep.subr.bf16.mxu0 0
  %134 = vmatpush2.bf16.msra.mxu0 0
  %135 = vmatprep.subr.bf16.mxu0 0
  %136 = vmatpush2.bf16.msra.mxu0 0
  %137 = vmatprep.subr.bf16.mxu0 0
  %138 = vmatpush2.bf16.msra.mxu0 0
  %139 = vmatprep.subr.bf16.mxu0 0
  %140 = vmatpush2.bf16.msra.mxu0 0
  %141 = vmatprep.subr.bf16.mxu0 0
  %142 = vmatpush2.bf16.msra.mxu0 0
  %143 = vmatprep.subr.bf16.mxu0 0
  %144 = vmatpush2.bf16.msra.mxu0 0
  %145 = vmatprep.subr.bf16.mxu0 0
  %146 = vmatpush2.bf16.msra.mxu0 0
  %147 = vmatprep.subr.bf16.mxu0 0
  %148 = vmatpush2.bf16.msra.mxu0 0
  %149 = vmatprep.mubr.bf16.mxu0 0
  %150 = vmatmul.mubr.bf16.gmra.mxu0 %v109
  %v151 = vpop.f32.mrf.mxu0
  %v152 = vadd.f32 0.0, %v151
  %v153 = vpop.f32.mrf.mxu0
  %v154 = vpop.f32.mrf.mxu0
  %v155 = vadd.f32 0.0, %v154
  %v156 = vpop.f32.mrf.mxu0
  %157 = vmatprep.mubr.bf16.mxu0 0
  %158 = vmatmul.mubr.bf16.gmra.mxu0 %v112
  %v159 = vpop.f32.mrf.mxu0
  %v160 = vadd.f32 0.0, %v159
  %v161 = vpop.f32.mrf.mxu0
  %v162 = vpop.f32.mrf.mxu0
  %v163 = vadd.f32 0.0, %v162
  %v164 = vpop.f32.mrf.mxu0
  %165 = vmatprep.mubr.bf16.mxu0 0
  %166 = vmatmul.mubr.bf16.gmra.mxu0 %v115
  %v167 = vpop.f32.mrf.mxu0
  %v168 = vadd.f32 0.0, %v167
  %v169 = vpop.f32.mrf.mxu0
  %v170 = vpop.f32.mrf.mxu0
  %v171 = vpop.f32.mrf.mxu0
  %172 = vdwg.mxu0
  %v174 = vunpack.c.l.b16 %v27
  %v175 = vpack.c.b16 %v174, %v174
  %v184 = vunpack.c.l.b16 %v28
  %v185 = vunpack.c.l.b16 %v29
  %v186 = vunpack.c.l.b16 %v30
  %v187 = vunpack.c.l.b16 %v31
  %v188 = vunpack.c.l.b16 %v32
  %v189 = vunpack.c.l.b16 %v33
  %v190 = vunpack.c.l.b16 %v34
  %v191 = vunpack.c.l.b16 %v35
  %v192 = vpack.c.b16 %v185, %v184
  %v193 = vpack.c.b16 %v187, %v186
  %v194 = vpack.c.b16 %v189, %v188
  %v195 = vpack.c.b16 %v191, %v190
  %v200 = vsel %vm107, %v56, 0
  %v202 = vsel %vm107, %v57, 0
  %v205 = vsel %vm107, %v175, 0
  %207 = vmatprep.subr.bf16.mxu0 0
  %208 = vmatpush1.bf16.msra.mxu0 0
  %209 = vmatprep.subr.bf16.mxu0 0
  %210 = vmatpush1.bf16.msra.mxu0 0
  %211 = vmatprep.subr.bf16.mxu0 0
  %212 = vmatpush1.bf16.msra.mxu0 0
  %213 = vmatprep.subr.bf16.mxu0 0
  %214 = vmatpush1.bf16.msra.mxu0 0
  %215 = vmatprep.subr.bf16.mxu0 0
  %216 = vmatpush1.bf16.msra.mxu0 %v195
  %217 = vmatprep.subr.bf16.mxu0 0
  %218 = vmatpush1.bf16.msra.mxu0 %v194
  %219 = vmatprep.subr.bf16.mxu0 0
  %220 = vmatpush1.bf16.msra.mxu0 %v193
  %221 = vmatprep.subr.bf16.mxu0 0
  %222 = vmatpush1.bf16.msra.mxu0 %v192
  %223 = vmatprep.subr.bf16.mxu0 0
  %224 = vmatpush2.bf16.msra.mxu0 0
  %225 = vmatprep.subr.bf16.mxu0 0
  %226 = vmatpush2.bf16.msra.mxu0 0
  %227 = vmatprep.subr.bf16.mxu0 0
  %228 = vmatpush2.bf16.msra.mxu0 0
  %229 = vmatprep.subr.bf16.mxu0 0
  %230 = vmatpush2.bf16.msra.mxu0 0
  %231 = vmatprep.subr.bf16.mxu0 0
  %232 = vmatpush2.bf16.msra.mxu0 0
  %233 = vmatprep.subr.bf16.mxu0 0
  %234 = vmatpush2.bf16.msra.mxu0 0
  %235 = vmatprep.subr.bf16.mxu0 0
  %236 = vmatpush2.bf16.msra.mxu0 0
  %237 = vmatprep.subr.bf16.mxu0 0
  %238 = vmatpush2.bf16.msra.mxu0 0
  %239 = vmatprep.mubr.bf16.mxu0 0
  %240 = vmatmul.mubr.bf16.gmra.mxu0 %v200
  %v241 = vpop.f32.mrf.mxu0
  %v242 = vadd.f32 %v152, %v241
  %v243 = vpop.f32.mrf.mxu0
  %v244 = vpop.f32.mrf.mxu0
  %v245 = vadd.f32 %v155, %v244
  %v246 = vpop.f32.mrf.mxu0
  %247 = vmatprep.mubr.bf16.mxu0 0
  %248 = vmatmul.mubr.bf16.gmra.mxu0 %v202
  %v249 = vpop.f32.mrf.mxu0
  %v250 = vadd.f32 %v160, %v249
  %v251 = vpop.f32.mrf.mxu0
  %v252 = vpop.f32.mrf.mxu0
  %v253 = vadd.f32 %v163, %v252
  %v254 = vpop.f32.mrf.mxu0
  %255 = vmatprep.mubr.bf16.mxu0 0
  %256 = vmatmul.mubr.bf16.gmra.mxu0 %v205
  %v257 = vpop.f32.mrf.mxu0
  %v258 = vadd.f32 %v168, %v257
  %v259 = vpop.f32.mrf.mxu0
  %v260 = vpop.f32.mrf.mxu0
  %v261 = vpop.f32.mrf.mxu0
  %262 = vdwg.mxu0
  %v263 = vld [vmem:[%s0] sm:$0xe]
  %s264 = scalar_lea.vmem %s1, 64
  %v265 = vld [vmem:[%s264] sm:$0xf]
  %v266 = vld [vmem:[%s264 + $0x4] sm:$0xf]
  %v267 = vld [vmem:[%s264 + $0x8] sm:$0xf]
  %v268 = vld [vmem:[%s264 + $0xc] sm:$0xf]
  %v269 = vld [vmem:[%s264 + $0x10] sm:$0xf]
  %v270 = vld [vmem:[%s264 + $0x14] sm:$0xf]
  %v271 = vld [vmem:[%s264 + $0x18] sm:$0xf]
  %v272 = vld [vmem:[%s264 + $0x1c] sm:$0xf]
  %v274 = vunpack.c.l.b16 %v263
  %v275 = vpack.c.b16 %v52, %v274
  %vm276 = vcmask 1046528
  %v277 = vrot.slane %v275, 1
  %v278 = vrot.slane %v57, 1
  %v279 = vsel %vm276, %v277, %v278
  %v280 = vrot.slane %v58, 1
  %v281 = vsel %vm276, %v278, %v280
  %v290 = vunpack.c.l.b16 %v265
  %v291 = vunpack.c.l.b16 %v266
  %v292 = vunpack.c.l.b16 %v267
  %v293 = vunpack.c.l.b16 %v268
  %v294 = vunpack.c.l.b16 %v269
  %v295 = vunpack.c.l.b16 %v270
  %v296 = vunpack.c.l.b16 %v271
  %v297 = vunpack.c.l.b16 %v272
  %v298 = vpack.c.b16 %v291, %v290
  %v299 = vpack.c.b16 %v293, %v292
  %v300 = vpack.c.b16 %v295, %v294
  %v301 = vpack.c.b16 %v297, %v296
  %v307 = vsel %vm107, %v279, 0
  %v310 = vsel %vm107, %v281, 0
  %v313 = vsel %vm107, %v280, 0
  %315 = vmatprep.subr.bf16.mxu0 0
  %316 = vmatpush1.bf16.msra.mxu0 0
  %317 = vmatprep.subr.bf16.mxu0 0
  %318 = vmatpush1.bf16.msra.mxu0 0
  %319 = vmatprep.subr.bf16.mxu0 0
  %320 = vmatpush1.bf16.msra.mxu0 0
  %321 = vmatprep.subr.bf16.mxu0 0
  %322 = vmatpush1.bf16.msra.mxu0 0
  %323 = vmatprep.subr.bf16.mxu0 0
  %324 = vmatpush1.bf16.msra.mxu0 %v301
  %325 = vmatprep.subr.bf16.mxu0 0
  %326 = vmatpush1.bf16.msra.mxu0 %v300
  %327 = vmatprep.subr.bf16.mxu0 0
  %328 = vmatpush1.bf16.msra.mxu0 %v299
  %329 = vmatprep.subr.bf16.mxu0 0
  %330 = vmatpush1.bf16.msra.mxu0 %v298
  %331 = vmatprep.subr.bf16.mxu0 0
  %332 = vmatpush2.bf16.msra.mxu0 0
  %333 = vmatprep.subr.bf16.mxu0 0
  %334 = vmatpush2.bf16.msra.mxu0 0
  %335 = vmatprep.subr.bf16.mxu0 0
  %336 = vmatpush2.bf16.msra.mxu0 0
  %337 = vmatprep.subr.bf16.mxu0 0
  %338 = vmatpush2.bf16.msra.mxu0 0
  %339 = vmatprep.subr.bf16.mxu0 0
  %340 = vmatpush2.bf16.msra.mxu0 0
  %341 = vmatprep.subr.bf16.mxu0 0
  %342 = vmatpush2.bf16.msra.mxu0 0
  %343 = vmatprep.subr.bf16.mxu0 0
  %344 = vmatpush2.bf16.msra.mxu0 0
  %345 = vmatprep.subr.bf16.mxu0 0
  %346 = vmatpush2.bf16.msra.mxu0 0
  %347 = vmatprep.mubr.bf16.mxu0 0
  %348 = vmatmul.mubr.bf16.gmra.mxu0 %v307
  %v349 = vpop.f32.mrf.mxu0
  %v350 = vadd.f32 0.0, %v349
  %v351 = vpop.f32.mrf.mxu0
  %v352 = vpop.f32.mrf.mxu0
  %v353 = vadd.f32 0.0, %v352
  %v354 = vpop.f32.mrf.mxu0
  %355 = vmatprep.mubr.bf16.mxu0 0
  %356 = vmatmul.mubr.bf16.gmra.mxu0 %v310
  %v357 = vpop.f32.mrf.mxu0
  %v358 = vadd.f32 0.0, %v357
  %v359 = vpop.f32.mrf.mxu0
  %v360 = vpop.f32.mrf.mxu0
  %v361 = vadd.f32 0.0, %v360
  %v362 = vpop.f32.mrf.mxu0
  %363 = vmatprep.mubr.bf16.mxu0 0
  %364 = vmatmul.mubr.bf16.gmra.mxu0 %v313
  %v365 = vpop.f32.mrf.mxu0
  %v366 = vadd.f32 0.0, %v365
  %v367 = vpop.f32.mrf.mxu0
  %v368 = vpop.f32.mrf.mxu0
  %v369 = vpop.f32.mrf.mxu0
  %370 = vdwg.mxu0
  %v371 = vadd.f32 %v242, %v350
  %v372 = vadd.f32 %v245, %v353
  %v373 = vadd.f32 %v250, %v358
  %v374 = vadd.f32 %v253, %v361
  %v375 = vadd.f32 %v258, %v366
  %v376 = vlaneseq
  %v377 = vshrl.u32 %v376, 7
  %v378 = vadd.s32 %v377, 8
  %v379 = vadd.s32 %v377, 16
  %v380 = vadd.s32 %v377, 24
  %v381 = vadd.s32 %v377, 32
  %vm382 = vcmp.lt.s32.totalorder %v377, 0
  %v383 = vsub.s32 0, %v377
  %v384 = vsel %vm382, %v383, %v377
  %v385 = vshrl.u32 %v384, 4
  %v386 = vand.u32 %v384, 15
  %v387 = vsub.s32 0, %v386
  %v388 = vsel %vm382, %v387, %v386
  %vm389 = vcmp.lt.s32.totalorder %v378, 0
  %v390 = vsub.s32 0, %v378
  %v391 = vsel %vm389, %v390, %v378
  %v392 = vshrl.u32 %v391, 4
  %v393 = vand.u32 %v391, 15
  %v394 = vsub.s32 0, %v393
  %v395 = vsel %vm389, %v394, %v393
  %vm396 = vcmp.lt.s32.totalorder %v379, 0
  %v397 = vsub.s32 0, %v379
  %v398 = vsel %vm396, %v397, %v379
  %v399 = vshrl.u32 %v398, 4
  %v400 = vand.u32 %v398, 15
  %v401 = vsub.s32 0, %v400
  %v402 = vsel %vm396, %v401, %v400
  %vm403 = vcmp.lt.s32.totalorder %v380, 0
  %v404 = vsub.s32 0, %v380
  %v405 = vsel %vm403, %v404, %v380
  %v406 = vshrl.u32 %v405, 4
  %v407 = vand.u32 %v405, 15
  %v408 = vsub.s32 0, %v407
  %v409 = vsel %vm403, %v408, %v407
  %vm410 = vcmp.lt.s32.totalorder %v381, 0
  %v411 = vsub.s32 0, %v381
  %v412 = vsel %vm410, %v411, %v381
  %v413 = vshrl.u32 %v412, 4
  %v414 = vand.u32 %v412, 15
  %v415 = vsub.s32 0, %v414
  %v416 = vsel %vm410, %v415, %v414
  %vm417 = vcmp.ne.s32.totalorder %v388, 0
  %vm418 = vcmp.ne.s32.totalorder %v395, 0
  %vm419 = vcmp.ne.s32.totalorder %v402, 0
  %vm420 = vcmp.ne.s32.totalorder %v409, 0
  %vm421 = vcmp.ne.s32.totalorder %v416, 0
  %vm422 = vcmp.lt.s32.totalorder %v388, 0
  %vm423 = vcmp.lt.s32.totalorder %v395, 0
  %vm424 = vcmp.lt.s32.totalorder %v402, 0
  %vm425 = vcmp.lt.s32.totalorder %v409, 0
  %vm426 = vcmp.lt.s32.totalorder %v416, 0
  %vm427 = vmand %vm422, %vm417
  %vm428 = vmand %vm423, %vm418
  %vm429 = vmand %vm424, %vm419
  %vm430 = vmand %vm425, %vm420
  %vm431 = vmand %vm426, %vm421
  %v432 = vadd.s32 %v388, 16
  %v433 = vadd.s32 %v395, 16
  %v434 = vadd.s32 %v402, 16
  %v435 = vadd.s32 %v409, 16
  %v436 = vadd.s32 %v416, 16
  %v437 = vsel %vm427, %v432, %v388
  %v438 = vsel %vm428, %v433, %v395
  %v439 = vsel %vm429, %v434, %v402
  %v440 = vsel %vm430, %v435, %v409
  %v441 = vsel %vm431, %v436, %v416
  %vm442 = vcmp.lt.s32.totalorder %v437, 14
  %vm443 = vcmp.lt.s32.totalorder %v438, 14
  %vm444 = vcmp.lt.s32.totalorder %v439, 14
  %vm445 = vcmp.lt.s32.totalorder %v440, 14
  %vm446 = vcmp.lt.s32.totalorder %v441, 14
  %vm447 = vcmp.lt.s32.totalorder %v377, 32
  %vm448 = vcmp.lt.s32.totalorder %v378, 32
  %vm449 = vcmp.lt.s32.totalorder %v379, 32
  %vm450 = vcmp.lt.s32.totalorder %v380, 32
  %vm451 = vcmp.lt.s32.totalorder %v381, 32
  %vm452 = vmand %vm442, %vm447
  %vm453 = vmand %vm443, %vm448
  %vm454 = vmand %vm444, %vm449
  %vm455 = vmand %vm445, %vm450
  %vm456 = vmand %vm446, %vm451
  %v457 = vsel %vm452, 1.0, 0.0
  %v458 = vsel %vm453, 1.0, 0.0
  %v459 = vsel %vm454, 1.0, 0.0
  %v460 = vsel %vm455, 1.0, 0.0
  %v461 = vsel %vm456, 1.0, 0.0
  %v462 = vadd.s32 %v377, 40
  %v463 = vadd.s32 %v377, 48
  %v464 = vadd.s32 %v377, 56
  %v465 = vadd.s32 %v377, 64
  %v466 = vadd.s32 %v377, 72
  %v467 = vadd.s32 %v377, 80
  %v468 = vadd.s32 %v377, 88
  %v469 = vadd.s32 %v377, 96
  %v470 = vadd.s32 %v377, 104
  %v471 = vadd.s32 %v377, 112
  %v472 = vadd.s32 %v377, 120
  %v473 = vlaneseq
  %v474 = vand.u32 %v473, 127
  %vm475 = vcmp.lt.s32.totalorder %v377, 0
  %v476 = vsub.s32 0, %v377
  %v477 = vsel %vm475, %v476, %v377
  %v478 = vshrl.u32 %v477, 3
  %v479 = vand.u32 %v477, 7
  %v480 = vsub.s32 0, %v479
  %v481 = vsel %vm475, %v480, %v479
  %vm482 = vcmp.lt.s32.totalorder %v378, 0
  %v483 = vsub.s32 0, %v378
  %v484 = vsel %vm482, %v483, %v378
  %v485 = vshrl.u32 %v484, 3
  %v486 = vand.u32 %v484, 7
  %v487 = vsub.s32 0, %v486
  %v488 = vsel %vm482, %v487, %v486
  %vm489 = vcmp.lt.s32.totalorder %v379, 0
  %v490 = vsub.s32 0, %v379
  %v491 = vsel %vm489, %v490, %v379
  %v492 = vshrl.u32 %v491, 3
  %v493 = vand.u32 %v491, 7
  %v494 = vsub.s32 0, %v493
  %v495 = vsel %vm489, %v494, %v493
  %vm496 = vcmp.lt.s32.totalorder %v380, 0
  %v497 = vsub.s32 0, %v380
  %v498 = vsel %vm496, %v497, %v380
  %v499 = vshrl.u32 %v498, 3
  %v500 = vand.u32 %v498, 7
  %v501 = vsub.s32 0, %v500
  %v502 = vsel %vm496, %v501, %v500
  %vm503 = vcmp.lt.s32.totalorder %v381, 0
  %v504 = vsub.s32 0, %v381
  %v505 = vsel %vm503, %v504, %v381
  %v506 = vshrl.u32 %v505, 3
  %v507 = vand.u32 %v505, 7
  %v508 = vsub.s32 0, %v507
  %v509 = vsel %vm503, %v508, %v507
  %vm510 = vcmp.lt.s32.totalorder %v462, 0
  %v511 = vsub.s32 0, %v462
  %v512 = vsel %vm510, %v511, %v462
  %v513 = vshrl.u32 %v512, 3
  %v514 = vand.u32 %v512, 7
  %v515 = vsub.s32 0, %v514
  %v516 = vsel %vm510, %v515, %v514
  %vm517 = vcmp.lt.s32.totalorder %v463, 0
  %v518 = vsub.s32 0, %v463
  %v519 = vsel %vm517, %v518, %v463
  %v520 = vshrl.u32 %v519, 3
  %v521 = vand.u32 %v519, 7
  %v522 = vsub.s32 0, %v521
  %v523 = vsel %vm517, %v522, %v521
  %vm524 = vcmp.lt.s32.totalorder %v464, 0
  %v525 = vsub.s32 0, %v464
  %v526 = vsel %vm524, %v525, %v464
  %v527 = vshrl.u32 %v526, 3
  %v528 = vand.u32 %v526, 7
  %v529 = vsub.s32 0, %v528
  %v530 = vsel %vm524, %v529, %v528
  %vm531 = vcmp.lt.s32.totalorder %v465, 0
  %v532 = vsub.s32 0, %v465
  %v533 = vsel %vm531, %v532, %v465
  %v534 = vshrl.u32 %v533, 3
  %v535 = vand.u32 %v533, 7
  %v536 = vsub.s32 0, %v535
  %v537 = vsel %vm531, %v536, %v535
  %vm538 = vcmp.lt.s32.totalorder %v466, 0
  %v539 = vsub.s32 0, %v466
  %v540 = vsel %vm538, %v539, %v466
  %v541 = vshrl.u32 %v540, 3
  %v542 = vand.u32 %v540, 7
  %v543 = vsub.s32 0, %v542
  %v544 = vsel %vm538, %v543, %v542
  %vm545 = vcmp.lt.s32.totalorder %v467, 0
  %v546 = vsub.s32 0, %v467
  %v547 = vsel %vm545, %v546, %v467
  %v548 = vshrl.u32 %v547, 3
  %v549 = vand.u32 %v547, 7
  %v550 = vsub.s32 0, %v549
  %v551 = vsel %vm545, %v550, %v549
  %vm552 = vcmp.lt.s32.totalorder %v468, 0
  %v553 = vsub.s32 0, %v468
  %v554 = vsel %vm552, %v553, %v468
  %v555 = vshrl.u32 %v554, 3
  %v556 = vand.u32 %v554, 7
  %v557 = vsub.s32 0, %v556
  %v558 = vsel %vm552, %v557, %v556
  %vm559 = vcmp.lt.s32.totalorder %v469, 0
  %v560 = vsub.s32 0, %v469
  %v561 = vsel %vm559, %v560, %v469
  %v562 = vshrl.u32 %v561, 3
  %v563 = vand.u32 %v561, 7
  %v564 = vsub.s32 0, %v563
  %v565 = vsel %vm559, %v564, %v563
  %vm566 = vcmp.lt.s32.totalorder %v470, 0
  %v567 = vsub.s32 0, %v470
  %v568 = vsel %vm566, %v567, %v470
  %v569 = vshrl.u32 %v568, 3
  %v570 = vand.u32 %v568, 7
  %v571 = vsub.s32 0, %v570
  %v572 = vsel %vm566, %v571, %v570
  %vm573 = vcmp.lt.s32.totalorder %v471, 0
  %v574 = vsub.s32 0, %v471
  %v575 = vsel %vm573, %v574, %v471
  %v576 = vshrl.u32 %v575, 3
  %v577 = vand.u32 %v575, 7
  %v578 = vsub.s32 0, %v577
  %v579 = vsel %vm573, %v578, %v577
  %vm580 = vcmp.lt.s32.totalorder %v472, 0
  %v581 = vsub.s32 0, %v472
  %v582 = vsel %vm580, %v581, %v472
  %v583 = vshrl.u32 %v582, 3
  %v584 = vand.u32 %v582, 7
  %v585 = vsub.s32 0, %v584
  %v586 = vsel %vm580, %v585, %v584
  %vm587 = vcmp.ne.s32.totalorder %v481, 0
  %vm588 = vcmp.ne.s32.totalorder %v488, 0
  %vm589 = vcmp.ne.s32.totalorder %v495, 0
  %vm590 = vcmp.ne.s32.totalorder %v502, 0
  %vm591 = vcmp.ne.s32.totalorder %v509, 0
  %vm592 = vcmp.ne.s32.totalorder %v516, 0
  %vm593 = vcmp.ne.s32.totalorder %v523, 0
  %vm594 = vcmp.ne.s32.totalorder %v530, 0
  %vm595 = vcmp.ne.s32.totalorder %v537, 0
  %vm596 = vcmp.ne.s32.totalorder %v544, 0
  %vm597 = vcmp.ne.s32.totalorder %v551, 0
  %vm598 = vcmp.ne.s32.totalorder %v558, 0
  %vm599 = vcmp.ne.s32.totalorder %v565, 0
  %vm600 = vcmp.ne.s32.totalorder %v572, 0
  %vm601 = vcmp.ne.s32.totalorder %v579, 0
  %vm602 = vcmp.ne.s32.totalorder %v586, 0
  %vm603 = vcmp.lt.s32.totalorder %v481, 0
  %vm604 = vcmp.lt.s32.totalorder %v488, 0
  %vm605 = vcmp.lt.s32.totalorder %v495, 0
  %vm606 = vcmp.lt.s32.totalorder %v502, 0
  %vm607 = vcmp.lt.s32.totalorder %v509, 0
  %vm608 = vcmp.lt.s32.totalorder %v516, 0
  %vm609 = vcmp.lt.s32.totalorder %v523, 0
  %vm610 = vcmp.lt.s32.totalorder %v530, 0
  %vm611 = vcmp.lt.s32.totalorder %v537, 0
  %vm612 = vcmp.lt.s32.totalorder %v544, 0
  %vm613 = vcmp.lt.s32.totalorder %v551, 0
  %vm614 = vcmp.lt.s32.totalorder %v558, 0
  %vm615 = vcmp.lt.s32.totalorder %v565, 0
  %vm616 = vcmp.lt.s32.totalorder %v572, 0
  %vm617 = vcmp.lt.s32.totalorder %v579, 0
  %vm618 = vcmp.lt.s32.totalorder %v586, 0
  %vm619 = vmand %vm603, %vm587
  %vm620 = vmand %vm604, %vm588
  %vm621 = vmand %vm605, %vm589
  %vm622 = vmand %vm606, %vm590
  %vm623 = vmand %vm607, %vm591
  %vm624 = vmand %vm608, %vm592
  %vm625 = vmand %vm609, %vm593
  %vm626 = vmand %vm610, %vm594
  %vm627 = vmand %vm611, %vm595
  %vm628 = vmand %vm612, %vm596
  %vm629 = vmand %vm613, %vm597
  %vm630 = vmand %vm614, %vm598
  %vm631 = vmand %vm615, %vm599
  %vm632 = vmand %vm616, %vm600
  %vm633 = vmand %vm617, %vm601
  %vm634 = vmand %vm618, %vm602
  %v635 = vadd.s32 %v481, 8
  %v636 = vadd.s32 %v488, 8
  %v637 = vadd.s32 %v495, 8
  %v638 = vadd.s32 %v502, 8
  %v639 = vadd.s32 %v509, 8
  %v640 = vadd.s32 %v516, 8
  %v641 = vadd.s32 %v523, 8
  %v642 = vadd.s32 %v530, 8
  %v643 = vadd.s32 %v537, 8
  %v644 = vadd.s32 %v544, 8
  %v645 = vadd.s32 %v551, 8
  %v646 = vadd.s32 %v558, 8
  %v647 = vadd.s32 %v565, 8
  %v648 = vadd.s32 %v572, 8
  %v649 = vadd.s32 %v579, 8
  %v650 = vadd.s32 %v586, 8
  %v651 = vsel %vm619, %v635, %v481
  %v652 = vsel %vm620, %v636, %v488
  %v653 = vsel %vm621, %v637, %v495
  %v654 = vsel %vm622, %v638, %v502
  %v655 = vsel %vm623, %v639, %v509
  %v656 = vsel %vm624, %v640, %v516
  %v657 = vsel %vm625, %v641, %v523
  %v658 = vsel %vm626, %v642, %v530
  %v659 = vsel %vm627, %v643, %v537
  %v660 = vsel %vm628, %v644, %v544
  %v661 = vsel %vm629, %v645, %v551
  %v662 = vsel %vm630, %v646, %v558
  %v663 = vsel %vm631, %v647, %v565
  %v664 = vsel %vm632, %v648, %v572
  %v665 = vsel %vm633, %v649, %v579
  %v666 = vsel %vm634, %v650, %v586
  %vm667 = vcmp.eq.s32.totalorder %v651, %v474
  %vm668 = vcmp.eq.s32.totalorder %v652, %v474
  %vm669 = vcmp.eq.s32.totalorder %v653, %v474
  %vm670 = vcmp.eq.s32.totalorder %v654, %v474
  %vm671 = vcmp.eq.s32.totalorder %v655, %v474
  %vm672 = vcmp.eq.s32.totalorder %v656, %v474
  %vm673 = vcmp.eq.s32.totalorder %v657, %v474
  %vm674 = vcmp.eq.s32.totalorder %v658, %v474
  %vm675 = vcmp.eq.s32.totalorder %v659, %v474
  %vm676 = vcmp.eq.s32.totalorder %v660, %v474
  %vm677 = vcmp.eq.s32.totalorder %v661, %v474
  %vm678 = vcmp.eq.s32.totalorder %v662, %v474
  %vm679 = vcmp.eq.s32.totalorder %v663, %v474
  %vm680 = vcmp.eq.s32.totalorder %v664, %v474
  %vm681 = vcmp.eq.s32.totalorder %v665, %v474
  %vm682 = vcmp.eq.s32.totalorder %v666, %v474
  %vm683 = vcmp.lt.s32.totalorder %v377, 112
  %vm684 = vcmp.lt.s32.totalorder %v378, 112
  %vm685 = vcmp.lt.s32.totalorder %v379, 112
  %vm686 = vcmp.lt.s32.totalorder %v380, 112
  %vm687 = vcmp.lt.s32.totalorder %v381, 112
  %vm688 = vcmp.lt.s32.totalorder %v462, 112
  %vm689 = vcmp.lt.s32.totalorder %v463, 112
  %vm690 = vcmp.lt.s32.totalorder %v464, 112
  %vm691 = vcmp.lt.s32.totalorder %v465, 112
  %vm692 = vcmp.lt.s32.totalorder %v466, 112
  %vm693 = vcmp.lt.s32.totalorder %v467, 112
  %vm694 = vcmp.lt.s32.totalorder %v468, 112
  %vm695 = vcmp.lt.s32.totalorder %v469, 112
  %vm696 = vcmp.lt.s32.totalorder %v470, 112
  %vm697 = vcmp.lt.s32.totalorder %v471, 112
  %vm698 = vcmp.lt.s32.totalorder %v472, 112
  %vm699 = vmand %vm667, %vm683
  %vm700 = vmand %vm668, %vm684
  %vm701 = vmand %vm669, %vm685
  %vm702 = vmand %vm670, %vm686
  %vm703 = vmand %vm671, %vm687
  %vm704 = vmand %vm672, %vm688
  %vm705 = vmand %vm673, %vm689
  %vm706 = vmand %vm674, %vm690
  %vm707 = vmand %vm675, %vm691
  %vm708 = vmand %vm676, %vm692
  %vm709 = vmand %vm677, %vm693
  %vm710 = vmand %vm678, %vm694
  %vm711 = vmand %vm679, %vm695
  %vm712 = vmand %vm680, %vm696
  %vm713 = vmand %vm681, %vm697
  %vm714 = vmand %vm682, %vm698
  %v715 = vsel %vm699, 1.0, 0.0
  %v716 = vsel %vm700, 1.0, 0.0
  %v717 = vsel %vm701, 1.0, 0.0
  %v718 = vsel %vm702, 1.0, 0.0
  %v719 = vsel %vm703, 1.0, 0.0
  %v720 = vsel %vm704, 1.0, 0.0
  %v721 = vsel %vm705, 1.0, 0.0
  %v722 = vsel %vm706, 1.0, 0.0
  %v723 = vsel %vm707, 1.0, 0.0
  %v724 = vsel %vm708, 1.0, 0.0
  %v725 = vsel %vm709, 1.0, 0.0
  %v726 = vsel %vm710, 1.0, 0.0
  %v727 = vsel %vm711, 1.0, 0.0
  %v728 = vsel %vm712, 1.0, 0.0
  %v729 = vsel %vm713, 1.0, 0.0
  %v730 = vsel %vm714, 1.0, 0.0
  %vm731 = vcmp.lt.s32.totalorder %v474, 0
  %v732 = vsub.s32 0, %v474
  %v733 = vsel %vm731, %v732, %v474
  %v734 = vshrl.u32 %v733, 3
  %v735 = vand.u32 %v733, 7
  %v736 = vsub.s32 0, %v735
  %v737 = vsel %vm731, %v736, %v735
  %vm738 = vcmp.ne.s32.totalorder %v737, 0
  %vm739 = vcmp.lt.s32.totalorder %v737, 0
  %vm740 = vmand %vm739, %vm738
  %v741 = vadd.s32 %v737, 8
  %v742 = vsel %vm740, %v741, %v737
  %vm743 = vcmp.eq.s32.totalorder %v742, %v377
  %vm744 = vcmp.lt.s32.totalorder %v474, 112
  %vm745 = vmand %vm743, %vm744
  %v746 = vsel %vm745, 1.0, 0.0
  %v747 = vmul.f32 %v371, %v457
  %v748 = vmul.f32 %v372, %v458
  %v749 = vmul.f32 %v373, %v459
  %v750 = vmul.f32 %v374, %v460
  %v751 = vmul.f32 %v375, %v461
  %v752 = vadd.f32 %v747, %v748
  %v753 = vadd.f32 %v752, %v749
  %v754 = vadd.f32 %v753, %v750
  %vm755 = vcmask 1041408
  %v756 = vsel %vm755, %v751, 0.0
  %v757 = vadd.f32 %v754, %v756
  %v758 = vrot.slane %v757, 4
  %v759 = vadd.f32 %v757, %v758
  %v760 = vrot.slane %v759, 2
  %v761 = vadd.f32 %v759, %v760
  %v762 = vrot.slane %v761, 1
  %v763 = vadd.f32 %v761, %v762
  %v764 = vmul.f32 %v747, %v371
  %v765 = vmul.f32 %v748, %v372
  %v766 = vmul.f32 %v749, %v373
  %v767 = vmul.f32 %v750, %v374
  %v768 = vmul.f32 %v751, %v375
  %v769 = vadd.f32 %v764, %v765
  %v770 = vadd.f32 %v769, %v766
  %v771 = vadd.f32 %v770, %v767
  %v772 = vsel %vm755, %v768, 0.0
  %v773 = vadd.f32 %v771, %v772
  %v774 = vrot.slane %v773, 4
  %v775 = vadd.f32 %v773, %v774
  %v776 = vrot.slane %v775, 2
  %v777 = vadd.f32 %v775, %v776
  %v778 = vrot.slane %v777, 1
  %v779 = vadd.f32 %v777, %v778
  %vm780 = vcmask 1040384
  %v781 = vsel %vm780, %v763, %v779
  %782 = vmatprep.subr.mxu0 0.0
  %783 = vmatpush1.msra.mxu0 %v730
  %784 = vmatprep.subr.mxu0 0.0
  %785 = vmatpush1.msra.mxu0 %v729
  %786 = vmatprep.subr.mxu0 0.0
  %787 = vmatpush1.msra.mxu0 %v728
  %788 = vmatprep.subr.mxu0 0.0
  %789 = vmatpush1.msra.mxu0 %v727
  %790 = vmatprep.subr.mxu0 0.0
  %791 = vmatpush1.msra.mxu0 %v726
  %792 = vmatprep.subr.mxu0 0.0
  %793 = vmatpush1.msra.mxu0 %v725
  %794 = vmatprep.subr.mxu0 0.0
  %795 = vmatpush1.msra.mxu0 %v724
  %796 = vmatprep.subr.mxu0 0.0
  %797 = vmatpush1.msra.mxu0 %v723
  %798 = vmatprep.subr.mxu0 0.0
  %799 = vmatpush1.msra.mxu0 %v722
  %800 = vmatprep.subr.mxu0 0.0
  %801 = vmatpush1.msra.mxu0 %v721
  %802 = vmatprep.subr.mxu0 0.0
  %803 = vmatpush1.msra.mxu0 %v720
  %804 = vmatprep.subr.mxu0 0.0
  %805 = vmatpush1.msra.mxu0 %v719
  %806 = vmatprep.subr.mxu0 0.0
  %807 = vmatpush1.msra.mxu0 %v718
  %808 = vmatprep.subr.mxu0 0.0
  %809 = vmatpush1.msra.mxu0 %v717
  %810 = vmatprep.subr.mxu0 0.0
  %811 = vmatpush1.msra.mxu0 %v716
  %812 = vmatprep.subr.mxu0 0.0
  %813 = vmatpush1.msra.mxu0 %v715
  %814 = vmatprep.subr.mxu0 0.0
  %815 = vmatpush2.msra.mxu0 0.0
  %816 = vmatprep.subr.mxu0 0.0
  %817 = vmatpush2.msra.mxu0 0.0
  %818 = vmatprep.subr.mxu0 0.0
  %819 = vmatpush2.msra.mxu0 0.0
  %820 = vmatprep.subr.mxu0 0.0
  %821 = vmatpush2.msra.mxu0 0.0
  %822 = vmatprep.subr.mxu0 0.0
  %823 = vmatpush2.msra.mxu0 0.0
  %824 = vmatprep.subr.mxu0 0.0
  %825 = vmatpush2.msra.mxu0 0.0
  %826 = vmatprep.subr.mxu0 0.0
  %827 = vmatpush2.msra.mxu0 0.0
  %828 = vmatprep.subr.mxu0 0.0
  %829 = vmatpush2.msra.mxu0 0.0
  %830 = vmatprep.subr.mxu0 0.0
  %831 = vmatpush2.msra.mxu0 0.0
  %832 = vmatprep.subr.mxu0 0.0
  %833 = vmatpush2.msra.mxu0 0.0
  %834 = vmatprep.subr.mxu0 0.0
  %835 = vmatpush2.msra.mxu0 0.0
  %836 = vmatprep.subr.mxu0 0.0
  %837 = vmatpush2.msra.mxu0 0.0
  %838 = vmatprep.subr.mxu0 0.0
  %839 = vmatpush2.msra.mxu0 0.0
  %840 = vmatprep.subr.mxu0 0.0
  %841 = vmatpush2.msra.mxu0 0.0
  %842 = vmatprep.subr.mxu0 0.0
  %843 = vmatpush2.msra.mxu0 0.0
  %844 = vmatprep.subr.mxu0 0.0
  %845 = vmatpush2.msra.mxu0 0.0
  %846 = vmatprep.mubr.f32.mxu0 0.0
  %847 = vmatmul.mubr.f32.gmra.mxu0 %v781
  %v848 = vpop.f32.mrf.mxu0
  %v849 = vadd.f32 0.0, %v848
  %v850 = vpop.f32.mrf.mxu0
  %851 = vdwg.mxu0
  %v852 = vmul.f32 %v849, 0.0025510204
  %v853 = vmul.f32 %v852, %v852
  %v855 = vrot.slane %v853, 7
  %v857 = vsub.f32 %v852, %v855
  %v858 = vadd.f32 %v857, 1e-05
  %v859 = vrsqrt.pop %v858
  %v861 = vlaneseq
  %v862 = vshrl.u32 %v861, 7
  %v863 = vsub.s32 0, %v862
  %v864 = vrot.slane %v21, %v863
  %v866 = vmul.f32 %v859, %v864
  %v868 = vrot.slane %v866, 1
  %v870 = vmul.f32 %v852, %v868
  %v871 = vsub.f32 %v22, %v870
  %v873 = vlaneseq
  %v874 = vshrl.u32 %v873, 7
  %v875 = vsub.s32 0, %v874
  %v876 = vrot.slane %v871, %v875
  %v878 = vsel %vm780, %v868, %v876
  %vm879 = vcmask 64512
  %v881 = vsel %vm879, %v878, 0
  %883 = vmatprep.subr.mxu0 0.0
  %884 = vmatpush1.msra.mxu0 0.0
  %885 = vmatprep.subr.mxu0 0.0
  %886 = vmatpush1.msra.mxu0 0.0
  %887 = vmatprep.subr.mxu0 0.0
  %888 = vmatpush1.msra.mxu0 0.0
  %889 = vmatprep.subr.mxu0 0.0
  %890 = vmatpush1.msra.mxu0 0.0
  %891 = vmatprep.subr.mxu0 0.0
  %892 = vmatpush1.msra.mxu0 0.0
  %893 = vmatprep.subr.mxu0 0.0
  %894 = vmatpush1.msra.mxu0 0.0
  %895 = vmatprep.subr.mxu0 0.0
  %896 = vmatpush1.msra.mxu0 0.0
  %897 = vmatprep.subr.mxu0 0.0
  %898 = vmatpush1.msra.mxu0 0.0
  %899 = vmatprep.subr.mxu0 0.0
  %900 = vmatpush1.msra.mxu0 0.0
  %901 = vmatprep.subr.mxu0 0.0
  %902 = vmatpush1.msra.mxu0 0.0
  %903 = vmatprep.subr.mxu0 0.0
  %904 = vmatpush1.msra.mxu0 0.0
  %905 = vmatprep.subr.mxu0 0.0
  %906 = vmatpush1.msra.mxu0 0.0
  %907 = vmatprep.subr.mxu0 0.0
  %908 = vmatpush1.msra.mxu0 0.0
  %909 = vmatprep.subr.mxu0 0.0
  %910 = vmatpush1.msra.mxu0 0.0
  %911 = vmatprep.subr.mxu0 0.0
  %912 = vmatpush1.msra.mxu0 0.0
  %913 = vmatprep.subr.mxu0 0.0
  %914 = vmatpush1.msra.mxu0 %v746
  %915 = vmatprep.subr.mxu0 0.0
  %916 = vmatpush2.msra.mxu0 0.0
  %917 = vmatprep.subr.mxu0 0.0
  %918 = vmatpush2.msra.mxu0 0.0
  %919 = vmatprep.subr.mxu0 0.0
  %920 = vmatpush2.msra.mxu0 0.0
  %921 = vmatprep.subr.mxu0 0.0
  %922 = vmatpush2.msra.mxu0 0.0
  %923 = vmatprep.subr.mxu0 0.0
  %924 = vmatpush2.msra.mxu0 0.0
  %925 = vmatprep.subr.mxu0 0.0
  %926 = vmatpush2.msra.mxu0 0.0
  %927 = vmatprep.subr.mxu0 0.0
  %928 = vmatpush2.msra.mxu0 0.0
  %929 = vmatprep.subr.mxu0 0.0
  %930 = vmatpush2.msra.mxu0 0.0
  %931 = vmatprep.subr.mxu0 0.0
  %932 = vmatpush2.msra.mxu0 0.0
  %933 = vmatprep.subr.mxu0 0.0
  %934 = vmatpush2.msra.mxu0 0.0
  %935 = vmatprep.subr.mxu0 0.0
  %936 = vmatpush2.msra.mxu0 0.0
  %937 = vmatprep.subr.mxu0 0.0
  %938 = vmatpush2.msra.mxu0 0.0
  %939 = vmatprep.subr.mxu0 0.0
  %940 = vmatpush2.msra.mxu0 0.0
  %941 = vmatprep.subr.mxu0 0.0
  %942 = vmatpush2.msra.mxu0 0.0
  %943 = vmatprep.subr.mxu0 0.0
  %944 = vmatpush2.msra.mxu0 0.0
  %945 = vmatprep.subr.mxu0 0.0
  %946 = vmatpush2.msra.mxu0 0.0
  %947 = vmatprep.mubr.f32.mxu0 0.0
  %948 = vmatmul.mubr.f32.gmra.mxu0 %v881
  %v949 = vpop.f32.mrf.mxu0
  %v950 = vadd.f32 0.0, %v949
  %v951 = vpop.f32.mrf.mxu0
  %952 = vdwg.mxu0
  %v953 = vlaneseq
  %v954 = vshrl.u32 %v953, 7
  %v955 = vsub.s32 0, %v954
  %v956 = vrot.slane %v950, %v955
  %v957 = vmul.f32 %v371, %v956
  %v958 = vmul.f32 %v372, %v956
  %v959 = vmul.f32 %v373, %v956
  %v960 = vmul.f32 %v374, %v956
  %v961 = vmul.f32 %v375, %v956
  %v962 = vlaneseq
  %v963 = vshrl.u32 %v962, 7
  %v964 = vsub.s32 1, %v963
  %v965 = vrot.slane %v950, %v964
  %v966 = vadd.f32 %v957, %v965
  %v967 = vadd.f32 %v958, %v965
  %v968 = vadd.f32 %v959, %v965
  %v969 = vadd.f32 %v960, %v965
  %v970 = vadd.f32 %v961, %v965
  %v971 = vmax.f32 %v966, 0.0
  %v972 = vmax.f32 %v967, 0.0
  %v973 = vmax.f32 %v968, 0.0
  %v974 = vmax.f32 %v969, 0.0
  %v975 = vmax.f32 %v970, 0.0
  %v976 = vpack.c.bf16 %v972, %v971
  %v977 = vpack.c.bf16 %v974, %v973
  %v978 = vpack.c.bf16 %v975, %v975
  %v982 = vunpack.c.l.b16 %v976
  %v983 = vunpack.c.h.b16 %v976
  %v984 = vunpack.c.l.b16 %v977
  %v985 = vunpack.c.h.b16 %v977
  %v986 = vunpack.c.l.b16 %v978
  %v987 = vpack.c.b16 %v982, %v982
  %v988 = vpack.c.b16 %v983, %v983
  %v989 = vpack.c.b16 %v984, %v984
  %v990 = vpack.c.b16 %v985, %v985
  %v991 = vpack.c.b16 %v986, %v986
  %997 = vst [vmem:[#allocation2] sm:$0xf] %v987
  %998 = vst [vmem:[#allocation2 + $0x4] sm:$0xf] %v988
  %999 = vst [vmem:[#allocation2 + $0x8] sm:$0xf] %v989
  %1000 = vst [vmem:[#allocation2 + $0xc] sm:$0xf] %v990
  %1001 = vst [vmem:[#allocation2 + $0x10] sm:$0x1] %v991
  %v1002 = vld [vmem:[#allocation2] sm:$0xf]
  %v1003 = vld [vmem:[#allocation2 + $0x4] sm:$0xf]
  %v1004 = vld [vmem:[#allocation2 + $0x8] sm:$0xf]
  %v1005 = vld [vmem:[#allocation2 + $0xc] sm:$0xf]
  %v1006 = vld [vmem:[%s2] sm:$0xf]
  %v1007 = vld [vmem:[%s2 + $0x4] sm:$0xf]
  %v1008 = vld [vmem:[%s2 + $0x8] sm:$0xf]
  %v1009 = vld [vmem:[%s2 + $0xc] sm:$0xf]
  %v1010 = vld [vmem:[%s2 + $0x10] sm:$0xf]
  %v1011 = vld [vmem:[%s2 + $0x14] sm:$0xf]
  %v1012 = vld [vmem:[%s2 + $0x18] sm:$0xf]
  %v1013 = vld [vmem:[%s2 + $0x1c] sm:$0xf]
  %v1014 = vld [vmem:[%s2 + $0x20] sm:$0xf]
  %v1015 = vld [vmem:[%s2 + $0x24] sm:$0xf]
  %v1016 = vld [vmem:[%s2 + $0x28] sm:$0xf]
  %v1017 = vld [vmem:[%s2 + $0x2c] sm:$0xf]
  %v1018 = vld [vmem:[%s2 + $0x30] sm:$0xf]
  %v1019 = vld [vmem:[%s2 + $0x34] sm:$0xf]
  %v1020 = vld [vmem:[%s2 + $0x38] sm:$0xf]
  %v1021 = vld [vmem:[%s2 + $0x3c] sm:$0xf]
  %v1022 = vld [vmem:[#allocation2 + $0x10] sm:$0x1]
  %s1023 = scalar_lea.vmem %s2, 64
  %v1024 = vld [vmem:[%s1023] sm:$0xf]
  %v1025 = vld [vmem:[%s1023 + $0x4] sm:$0xf]
  %v1026 = vld [vmem:[%s1023 + $0x8] sm:$0xf]
  %v1027 = vld [vmem:[%s1023 + $0xc] sm:$0xf]
  %v1028 = vld [vmem:[%s1023 + $0x10] sm:$0xf]
  %v1029 = vld [vmem:[%s1023 + $0x14] sm:$0xf]
  %v1030 = vld [vmem:[%s1023 + $0x18] sm:$0xf]
  %v1031 = vld [vmem:[%s1023 + $0x1c] sm:$0xf]
  %v1032 = vld [vmem:[%s1023 + $0x20] sm:$0xf]
  %v1033 = vld [vmem:[%s1023 + $0x24] sm:$0xf]
  %v1034 = vld [vmem:[%s1023 + $0x28] sm:$0xf]
  %v1035 = vld [vmem:[%s1023 + $0x2c] sm:$0xf]
  %v1036 = vld [vmem:[%s1023 + $0x30] sm:$0xf]
  %v1037 = vld [vmem:[%s1023 + $0x34] sm:$0xf]
  %v1038 = vld [vmem:[%s1023 + $0x38] sm:$0xf]
  %v1039 = vld [vmem:[%s1023 + $0x3c] sm:$0xf]
  %v1045 = vunpack.c.l.b16 %v1002
  %v1046 = vunpack.c.l.b16 %v1003
  %v1047 = vunpack.c.l.b16 %v1004
  %v1048 = vunpack.c.l.b16 %v1005
  %v1049 = vunpack.c.l.b16 %v1022
  %v1050 = vpack.c.b16 %v1046, %v1045
  %v1051 = vpack.c.b16 %v1048, %v1047
  %v1052 = vpack.c.b16 %v1049, %v1049
  %v1054 = vshrl.u32 %v1050, 16
  %v1056 = vshll.u32 %v1050, 16
  %v1058 = vrot.slane %v1056, 1
  %v1059 = vor.u32 %v1054, %v1058
  %v1061 = vshll.u32 %v1051, 16
  %v1063 = vrot.slane %v1061, 1
  %v1064 = vsel %vm59, %v1059, %v1063
  %v1065 = vshrl.u32 %v1051, 16
  %v1067 = vor.u32 %v1065, %v1063
  %v1069 = vshll.u32 %v1052, 16
  %v1071 = vrot.slane %v1069, 1
  %v1072 = vsel %vm59, %v1067, %v1071
  %v1091 = vunpack.c.l.b16 %v1024
  %v1092 = vunpack.c.l.b16 %v1025
  %v1093 = vunpack.c.l.b16 %v1026
  %v1094 = vunpack.c.l.b16 %v1027
  %v1095 = vunpack.c.l.b16 %v1028
  %v1096 = vunpack.c.l.b16 %v1029
  %v1097 = vunpack.c.l.b16 %v1030
  %v1098 = vunpack.c.l.b16 %v1031
  %v1099 = vunpack.c.l.b16 %v1032
  %v1100 = vunpack.c.l.b16 %v1033
  %v1101 = vunpack.c.l.b16 %v1034
  %v1102 = vunpack.c.l.b16 %v1035
  %v1103 = vunpack.c.l.b16 %v1036
  %v1104 = vunpack.c.l.b16 %v1037
  %v1105 = vunpack.c.l.b16 %v1038
  %v1106 = vunpack.c.l.b16 %v1039
  %v1107 = vpack.c.b16 %v1092, %v1091
  %v1108 = vpack.c.b16 %v1094, %v1093
  %v1109 = vpack.c.b16 %v1096, %v1095
  %v1110 = vpack.c.b16 %v1098, %v1097
  %v1111 = vpack.c.b16 %v1100, %v1099
  %v1112 = vpack.c.b16 %v1102, %v1101
  %v1113 = vpack.c.b16 %v1104, %v1103
  %v1114 = vpack.c.b16 %v1106, %v1105
  %1123 = vmatprep.subr.bf16.mxu0 0
  %1124 = vmatpush1.bf16.msra.mxu0 %v1114
  %1125 = vmatprep.subr.bf16.mxu0 0
  %1126 = vmatpush1.bf16.msra.mxu0 %v1113
  %1127 = vmatprep.subr.bf16.mxu0 0
  %1128 = vmatpush1.bf16.msra.mxu0 %v1112
  %1129 = vmatprep.subr.bf16.mxu0 0
  %1130 = vmatpush1.bf16.msra.mxu0 %v1111
  %1131 = vmatprep.subr.bf16.mxu0 0
  %1132 = vmatpush1.bf16.msra.mxu0 %v1110
  %1133 = vmatprep.subr.bf16.mxu0 0
  %1134 = vmatpush1.bf16.msra.mxu0 %v1109
  %1135 = vmatprep.subr.bf16.mxu0 0
  %1136 = vmatpush1.bf16.msra.mxu0 %v1108
  %1137 = vmatprep.subr.bf16.mxu0 0
  %1138 = vmatpush1.bf16.msra.mxu0 %v1107
  %1139 = vmatprep.subr.bf16.mxu0 0
  %1140 = vmatpush2.bf16.msra.mxu0 0
  %1141 = vmatprep.subr.bf16.mxu0 0
  %1142 = vmatpush2.bf16.msra.mxu0 0
  %1143 = vmatprep.subr.bf16.mxu0 0
  %1144 = vmatpush2.bf16.msra.mxu0 0
  %1145 = vmatprep.subr.bf16.mxu0 0
  %1146 = vmatpush2.bf16.msra.mxu0 0
  %1147 = vmatprep.subr.bf16.mxu0 0
  %1148 = vmatpush2.bf16.msra.mxu0 0
  %1149 = vmatprep.subr.bf16.mxu0 0
  %1150 = vmatpush2.bf16.msra.mxu0 0
  %1151 = vmatprep.subr.bf16.mxu0 0
  %1152 = vmatpush2.bf16.msra.mxu0 0
  %1153 = vmatprep.subr.bf16.mxu0 0
  %1154 = vmatpush2.bf16.msra.mxu0 0
  %1155 = vmatprep.mubr.bf16.mxu0 0
  %1156 = vmatmul.mubr.bf16.gmra.mxu0 %v1064
  %v1157 = vpop.f32.mrf.mxu0
  %v1158 = vadd.f32 0.0, %v1157
  %v1159 = vpop.f32.mrf.mxu0
  %v1160 = vpop.f32.mrf.mxu0
  %v1161 = vadd.f32 0.0, %v1160
  %v1162 = vpop.f32.mrf.mxu0
  %1163 = vmatprep.mubr.bf16.mxu0 0
  %1164 = vmatmul.mubr.bf16.gmra.mxu0 %v1072
  %v1165 = vpop.f32.mrf.mxu0
  %v1166 = vadd.f32 0.0, %v1165
  %v1167 = vpop.f32.mrf.mxu0
  %v1168 = vpop.f32.mrf.mxu0
  %v1169 = vadd.f32 0.0, %v1168
  %v1170 = vpop.f32.mrf.mxu0
  %1171 = vdwg.mxu0
  %v1190 = vunpack.c.l.b16 %v1006
  %v1191 = vunpack.c.l.b16 %v1007
  %v1192 = vunpack.c.l.b16 %v1008
  %v1193 = vunpack.c.l.b16 %v1009
  %v1194 = vunpack.c.l.b16 %v1010
  %v1195 = vunpack.c.l.b16 %v1011
  %v1196 = vunpack.c.l.b16 %v1012
  %v1197 = vunpack.c.l.b16 %v1013
  %v1198 = vunpack.c.l.b16 %v1014
  %v1199 = vunpack.c.l.b16 %v1015
  %v1200 = vunpack.c.l.b16 %v1016
  %v1201 = vunpack.c.l.b16 %v1017
  %v1202 = vunpack.c.l.b16 %v1018
  %v1203 = vunpack.c.l.b16 %v1019
  %v1204 = vunpack.c.l.b16 %v1020
  %v1205 = vunpack.c.l.b16 %v1021
  %v1206 = vpack.c.b16 %v1191, %v1190
  %v1207 = vpack.c.b16 %v1193, %v1192
  %v1208 = vpack.c.b16 %v1195, %v1194
  %v1209 = vpack.c.b16 %v1197, %v1196
  %v1210 = vpack.c.b16 %v1199, %v1198
  %v1211 = vpack.c.b16 %v1201, %v1200
  %v1212 = vpack.c.b16 %v1203, %v1202
  %v1213 = vpack.c.b16 %v1205, %v1204
  %1222 = vmatprep.subr.bf16.mxu0 0
  %1223 = vmatpush1.bf16.msra.mxu0 %v1213
  %1224 = vmatprep.subr.bf16.mxu0 0
  %1225 = vmatpush1.bf16.msra.mxu0 %v1212
  %1226 = vmatprep.subr.bf16.mxu0 0
  %1227 = vmatpush1.bf16.msra.mxu0 %v1211
  %1228 = vmatprep.subr.bf16.mxu0 0
  %1229 = vmatpush1.bf16.msra.mxu0 %v1210
  %1230 = vmatprep.subr.bf16.mxu0 0
  %1231 = vmatpush1.bf16.msra.mxu0 %v1209
  %1232 = vmatprep.subr.bf16.mxu0 0
  %1233 = vmatpush1.bf16.msra.mxu0 %v1208
  %1234 = vmatprep.subr.bf16.mxu0 0
  %1235 = vmatpush1.bf16.msra.mxu0 %v1207
  %1236 = vmatprep.subr.bf16.mxu0 0
  %1237 = vmatpush1.bf16.msra.mxu0 %v1206
  %1238 = vmatprep.subr.bf16.mxu0 0
  %1239 = vmatpush2.bf16.msra.mxu0 0
  %1240 = vmatprep.subr.bf16.mxu0 0
  %1241 = vmatpush2.bf16.msra.mxu0 0
  %1242 = vmatprep.subr.bf16.mxu0 0
  %1243 = vmatpush2.bf16.msra.mxu0 0
  %1244 = vmatprep.subr.bf16.mxu0 0
  %1245 = vmatpush2.bf16.msra.mxu0 0
  %1246 = vmatprep.subr.bf16.mxu0 0
  %1247 = vmatpush2.bf16.msra.mxu0 0
  %1248 = vmatprep.subr.bf16.mxu0 0
  %1249 = vmatpush2.bf16.msra.mxu0 0
  %1250 = vmatprep.subr.bf16.mxu0 0
  %1251 = vmatpush2.bf16.msra.mxu0 0
  %1252 = vmatprep.subr.bf16.mxu0 0
  %1253 = vmatpush2.bf16.msra.mxu0 0
  %1254 = vmatprep.mubr.bf16.mxu0 0
  %1255 = vmatmul.mubr.bf16.gmra.mxu0 %v1050
  %v1256 = vpop.f32.mrf.mxu0
  %v1257 = vadd.f32 %v1158, %v1256
  %v1258 = vpop.f32.mrf.mxu0
  %v1259 = vpop.f32.mrf.mxu0
  %v1260 = vadd.f32 %v1161, %v1259
  %v1261 = vpop.f32.mrf.mxu0
  %1262 = vmatprep.mubr.bf16.mxu0 0
  %1263 = vmatmul.mubr.bf16.gmra.mxu0 %v1051
  %v1264 = vpop.f32.mrf.mxu0
  %v1265 = vadd.f32 %v1166, %v1264
  %v1266 = vpop.f32.mrf.mxu0
  %v1267 = vpop.f32.mrf.mxu0
  %v1268 = vadd.f32 %v1169, %v1267
  %v1269 = vpop.f32.mrf.mxu0
  %1270 = vdwg.mxu0
  %v1271 = vld [vmem:[#allocation2] sm:$0xe]
  %s1272 = scalar_lea.vmem %s2, 128
  %v1273 = vld [vmem:[%s1272] sm:$0xf]
  %v1274 = vld [vmem:[%s1272 + $0x4] sm:$0xf]
  %v1275 = vld [vmem:[%s1272 + $0x8] sm:$0xf]
  %v1276 = vld [vmem:[%s1272 + $0xc] sm:$0xf]
  %v1277 = vld [vmem:[%s1272 + $0x10] sm:$0xf]
  %v1278 = vld [vmem:[%s1272 + $0x14] sm:$0xf]
  %v1279 = vld [vmem:[%s1272 + $0x18] sm:$0xf]
  %v1280 = vld [vmem:[%s1272 + $0x1c] sm:$0xf]
  %v1281 = vld [vmem:[%s1272 + $0x20] sm:$0xf]
  %v1282 = vld [vmem:[%s1272 + $0x24] sm:$0xf]
  %v1283 = vld [vmem:[%s1272 + $0x28] sm:$0xf]
  %v1284 = vld [vmem:[%s1272 + $0x2c] sm:$0xf]
  %v1285 = vld [vmem:[%s1272 + $0x30] sm:$0xf]
  %v1286 = vld [vmem:[%s1272 + $0x34] sm:$0xf]
  %v1287 = vld [vmem:[%s1272 + $0x38] sm:$0xf]
  %v1288 = vld [vmem:[%s1272 + $0x3c] sm:$0xf]
  %v1290 = vunpack.c.l.b16 %v1271
  %v1291 = vpack.c.b16 %v1046, %v1290
  %v1292 = vrot.slane %v1291, 1
  %v1293 = vrot.slane %v1051, 1
  %v1294 = vsel %vm276, %v1292, %v1293
  %v1295 = vrot.slane %v1052, 1
  %v1296 = vsel %vm276, %v1293, %v1295
  %v1315 = vunpack.c.l.b16 %v1273
  %v1316 = vunpack.c.l.b16 %v1274
  %v1317 = vunpack.c.l.b16 %v1275
  %v1318 = vunpack.c.l.b16 %v1276
  %v1319 = vunpack.c.l.b16 %v1277
  %v1320 = vunpack.c.l.b16 %v1278
  %v1321 = vunpack.c.l.b16 %v1279
  %v1322 = vunpack.c.l.b16 %v1280
  %v1323 = vunpack.c.l.b16 %v1281
  %v1324 = vunpack.c.l.b16 %v1282
  %v1325 = vunpack.c.l.b16 %v1283
  %v1326 = vunpack.c.l.b16 %v1284
  %v1327 = vunpack.c.l.b16 %v1285
  %v1328 = vunpack.c.l.b16 %v1286
  %v1329 = vunpack.c.l.b16 %v1287
  %v1330 = vunpack.c.l.b16 %v1288
  %v1331 = vpack.c.b16 %v1316, %v1315
  %v1332 = vpack.c.b16 %v1318, %v1317
  %v1333 = vpack.c.b16 %v1320, %v1319
  %v1334 = vpack.c.b16 %v1322, %v1321
  %v1335 = vpack.c.b16 %v1324, %v1323
  %v1336 = vpack.c.b16 %v1326, %v1325
  %v1337 = vpack.c.b16 %v1328, %v1327
  %v1338 = vpack.c.b16 %v1330, %v1329
  %1347 = vmatprep.subr.bf16.mxu0 0
  %1348 = vmatpush1.bf16.msra.mxu0 %v1338
  %1349 = vmatprep.subr.bf16.mxu0 0
  %1350 = vmatpush1.bf16.msra.mxu0 %v1337
  %1351 = vmatprep.subr.bf16.mxu0 0
  %1352 = vmatpush1.bf16.msra.mxu0 %v1336
  %1353 = vmatprep.subr.bf16.mxu0 0
  %1354 = vmatpush1.bf16.msra.mxu0 %v1335
  %1355 = vmatprep.subr.bf16.mxu0 0
  %1356 = vmatpush1.bf16.msra.mxu0 %v1334
  %1357 = vmatprep.subr.bf16.mxu0 0
  %1358 = vmatpush1.bf16.msra.mxu0 %v1333
  %1359 = vmatprep.subr.bf16.mxu0 0
  %1360 = vmatpush1.bf16.msra.mxu0 %v1332
  %1361 = vmatprep.subr.bf16.mxu0 0
  %1362 = vmatpush1.bf16.msra.mxu0 %v1331
  %1363 = vmatprep.subr.bf16.mxu0 0
  %1364 = vmatpush2.bf16.msra.mxu0 0
  %1365 = vmatprep.subr.bf16.mxu0 0
  %1366 = vmatpush2.bf16.msra.mxu0 0
  %1367 = vmatprep.subr.bf16.mxu0 0
  %1368 = vmatpush2.bf16.msra.mxu0 0
  %1369 = vmatprep.subr.bf16.mxu0 0
  %1370 = vmatpush2.bf16.msra.mxu0 0
  %1371 = vmatprep.subr.bf16.mxu0 0
  %1372 = vmatpush2.bf16.msra.mxu0 0
  %1373 = vmatprep.subr.bf16.mxu0 0
  %1374 = vmatpush2.bf16.msra.mxu0 0
  %1375 = vmatprep.subr.bf16.mxu0 0
  %1376 = vmatpush2.bf16.msra.mxu0 0
  %1377 = vmatprep.subr.bf16.mxu0 0
  %1378 = vmatpush2.bf16.msra.mxu0 0
  %1379 = vmatprep.mubr.bf16.mxu0 0
  %1380 = vmatmul.mubr.bf16.gmra.mxu0 %v1294
  %v1381 = vpop.f32.mrf.mxu0
  %v1382 = vadd.f32 0.0, %v1381
  %v1383 = vpop.f32.mrf.mxu0
  %v1384 = vpop.f32.mrf.mxu0
  %v1385 = vadd.f32 0.0, %v1384
  %v1386 = vpop.f32.mrf.mxu0
  %1387 = vmatprep.mubr.bf16.mxu0 0
  %1388 = vmatmul.mubr.bf16.gmra.mxu0 %v1296
  %v1389 = vpop.f32.mrf.mxu0
  %v1390 = vadd.f32 0.0, %v1389
  %v1391 = vpop.f32.mrf.mxu0
  %v1392 = vpop.f32.mrf.mxu0
  %v1393 = vadd.f32 0.0, %v1392
  %v1394 = vpop.f32.mrf.mxu0
  %1395 = vdwg.mxu0
  %v1396 = vadd.f32 %v1257, %v1382
  %v1397 = vadd.f32 %v1260, %v1385
  %v1398 = vadd.f32 %v1265, %v1390
  %v1399 = vadd.f32 %v1268, %v1393
  %vm1400 = vcmp.lt.s32.totalorder %v437, 12
  %vm1401 = vcmp.lt.s32.totalorder %v438, 12
  %vm1402 = vcmp.lt.s32.totalorder %v439, 12
  %vm1403 = vcmp.lt.s32.totalorder %v440, 12
  %vm1404 = vmand %vm1400, %vm447
  %vm1405 = vmand %vm1401, %vm448
  %vm1406 = vmand %vm1402, %vm449
  %vm1407 = vmand %vm1403, %vm450
  %v1408 = vsel %vm1404, 1.0, 0.0
  %v1409 = vsel %vm1405, 1.0, 0.0
  %v1410 = vsel %vm1406, 1.0, 0.0
  %v1411 = vsel %vm1407, 1.0, 0.0
  %vm1412 = vcmp.lt.s32.totalorder %v377, 96
  %vm1413 = vcmp.lt.s32.totalorder %v378, 96
  %vm1414 = vcmp.lt.s32.totalorder %v379, 96
  %vm1415 = vcmp.lt.s32.totalorder %v380, 96
  %vm1416 = vcmp.lt.s32.totalorder %v381, 96
  %vm1417 = vcmp.lt.s32.totalorder %v462, 96
  %vm1418 = vcmp.lt.s32.totalorder %v463, 96
  %vm1419 = vcmp.lt.s32.totalorder %v464, 96
  %vm1420 = vcmp.lt.s32.totalorder %v465, 96
  %vm1421 = vcmp.lt.s32.totalorder %v466, 96
  %vm1422 = vcmp.lt.s32.totalorder %v467, 96
  %vm1423 = vcmp.lt.s32.totalorder %v468, 96
  %vm1424 = vcmp.lt.s32.totalorder %v469, 96
  %vm1425 = vcmp.lt.s32.totalorder %v470, 96
  %vm1426 = vcmp.lt.s32.totalorder %v471, 96
  %vm1427 = vcmp.lt.s32.totalorder %v472, 96
  %vm1428 = vmand %vm667, %vm1412
  %vm1429 = vmand %vm668, %vm1413
  %vm1430 = vmand %vm669, %vm1414
  %vm1431 = vmand %vm670, %vm1415
  %vm1432 = vmand %vm671, %vm1416
  %vm1433 = vmand %vm672, %vm1417
  %vm1434 = vmand %vm673, %vm1418
  %vm1435 = vmand %vm674, %vm1419
  %vm1436 = vmand %vm675, %vm1420
  %vm1437 = vmand %vm676, %vm1421
  %vm1438 = vmand %vm677, %vm1422
  %vm1439 = vmand %vm678, %vm1423
  %vm1440 = vmand %vm679, %vm1424
  %vm1441 = vmand %vm680, %vm1425
  %vm1442 = vmand %vm681, %vm1426
  %vm1443 = vmand %vm682, %vm1427
  %v1444 = vsel %vm1428, 1.0, 0.0
  %v1445 = vsel %vm1429, 1.0, 0.0
  %v1446 = vsel %vm1430, 1.0, 0.0
  %v1447 = vsel %vm1431, 1.0, 0.0
  %v1448 = vsel %vm1432, 1.0, 0.0
  %v1449 = vsel %vm1433, 1.0, 0.0
  %v1450 = vsel %vm1434, 1.0, 0.0
  %v1451 = vsel %vm1435, 1.0, 0.0
  %v1452 = vsel %vm1436, 1.0, 0.0
  %v1453 = vsel %vm1437, 1.0, 0.0
  %v1454 = vsel %vm1438, 1.0, 0.0
  %v1455 = vsel %vm1439, 1.0, 0.0
  %v1456 = vsel %vm1440, 1.0, 0.0
  %v1457 = vsel %vm1441, 1.0, 0.0
  %v1458 = vsel %vm1442, 1.0, 0.0
  %v1459 = vsel %vm1443, 1.0, 0.0
  %vm1460 = vcmp.lt.s32.totalorder %v474, 96
  %vm1461 = vmand %vm743, %vm1460
  %v1462 = vsel %vm1461, 1.0, 0.0
  %v1463 = vmul.f32 %v1396, %v1408
  %v1464 = vmul.f32 %v1397, %v1409
  %v1465 = vmul.f32 %v1398, %v1410
  %v1466 = vmul.f32 %v1399, %v1411
  %v1467 = vadd.f32 %v1463, %v1464
  %v1468 = vadd.f32 %v1467, %v1465
  %v1469 = vadd.f32 %v1468, %v1466
  %v1470 = vrot.slane %v1469, 4
  %v1471 = vadd.f32 %v1469, %v1470
  %v1472 = vrot.slane %v1471, 2
  %v1473 = vadd.f32 %v1471, %v1472
  %v1474 = vrot.slane %v1473, 1
  %v1475 = vadd.f32 %v1473, %v1474
  %v1476 = vmul.f32 %v1463, %v1396
  %v1477 = vmul.f32 %v1464, %v1397
  %v1478 = vmul.f32 %v1465, %v1398
  %v1479 = vmul.f32 %v1466, %v1399
  %v1480 = vadd.f32 %v1476, %v1477
  %v1481 = vadd.f32 %v1480, %v1478
  %v1482 = vadd.f32 %v1481, %v1479
  %v1483 = vrot.slane %v1482, 4
  %v1484 = vadd.f32 %v1482, %v1483
  %v1485 = vrot.slane %v1484, 2
  %v1486 = vadd.f32 %v1484, %v1485
  %v1487 = vrot.slane %v1486, 1
  %v1488 = vadd.f32 %v1486, %v1487
  %v1489 = vsel %vm780, %v1475, %v1488
  %1490 = vmatprep.subr.mxu0 0.0
  %1491 = vmatpush1.msra.mxu0 %v1459
  %1492 = vmatprep.subr.mxu0 0.0
  %1493 = vmatpush1.msra.mxu0 %v1458
  %1494 = vmatprep.subr.mxu0 0.0
  %1495 = vmatpush1.msra.mxu0 %v1457
  %1496 = vmatprep.subr.mxu0 0.0
  %1497 = vmatpush1.msra.mxu0 %v1456
  %1498 = vmatprep.subr.mxu0 0.0
  %1499 = vmatpush1.msra.mxu0 %v1455
  %1500 = vmatprep.subr.mxu0 0.0
  %1501 = vmatpush1.msra.mxu0 %v1454
  %1502 = vmatprep.subr.mxu0 0.0
  %1503 = vmatpush1.msra.mxu0 %v1453
  %1504 = vmatprep.subr.mxu0 0.0
  %1505 = vmatpush1.msra.mxu0 %v1452
  %1506 = vmatprep.subr.mxu0 0.0
  %1507 = vmatpush1.msra.mxu0 %v1451
  %1508 = vmatprep.subr.mxu0 0.0
  %1509 = vmatpush1.msra.mxu0 %v1450
  %1510 = vmatprep.subr.mxu0 0.0
  %1511 = vmatpush1.msra.mxu0 %v1449
  %1512 = vmatprep.subr.mxu0 0.0
  %1513 = vmatpush1.msra.mxu0 %v1448
  %1514 = vmatprep.subr.mxu0 0.0
  %1515 = vmatpush1.msra.mxu0 %v1447
  %1516 = vmatprep.subr.mxu0 0.0
  %1517 = vmatpush1.msra.mxu0 %v1446
  %1518 = vmatprep.subr.mxu0 0.0
  %1519 = vmatpush1.msra.mxu0 %v1445
  %1520 = vmatprep.subr.mxu0 0.0
  %1521 = vmatpush1.msra.mxu0 %v1444
  %1522 = vmatprep.subr.mxu0 0.0
  %1523 = vmatpush2.msra.mxu0 0.0
  %1524 = vmatprep.subr.mxu0 0.0
  %1525 = vmatpush2.msra.mxu0 0.0
  %1526 = vmatprep.subr.mxu0 0.0
  %1527 = vmatpush2.msra.mxu0 0.0
  %1528 = vmatprep.subr.mxu0 0.0
  %1529 = vmatpush2.msra.mxu0 0.0
  %1530 = vmatprep.subr.mxu0 0.0
  %1531 = vmatpush2.msra.mxu0 0.0
  %1532 = vmatprep.subr.mxu0 0.0
  %1533 = vmatpush2.msra.mxu0 0.0
  %1534 = vmatprep.subr.mxu0 0.0
  %1535 = vmatpush2.msra.mxu0 0.0
  %1536 = vmatprep.subr.mxu0 0.0
  %1537 = vmatpush2.msra.mxu0 0.0
  %1538 = vmatprep.subr.mxu0 0.0
  %1539 = vmatpush2.msra.mxu0 0.0
  %1540 = vmatprep.subr.mxu0 0.0
  %1541 = vmatpush2.msra.mxu0 0.0
  %1542 = vmatprep.subr.mxu0 0.0
  %1543 = vmatpush2.msra.mxu0 0.0
  %1544 = vmatprep.subr.mxu0 0.0
  %1545 = vmatpush2.msra.mxu0 0.0
  %1546 = vmatprep.subr.mxu0 0.0
  %1547 = vmatpush2.msra.mxu0 0.0
  %1548 = vmatprep.subr.mxu0 0.0
  %1549 = vmatpush2.msra.mxu0 0.0
  %1550 = vmatprep.subr.mxu0 0.0
  %1551 = vmatpush2.msra.mxu0 0.0
  %1552 = vmatprep.subr.mxu0 0.0
  %1553 = vmatpush2.msra.mxu0 0.0
  %1554 = vmatprep.mubr.f32.mxu0 0.0
  %1555 = vmatmul.mubr.f32.gmra.mxu0 %v1489
  %v1556 = vpop.f32.mrf.mxu0
  %v1557 = vadd.f32 0.0, %v1556
  %v1558 = vpop.f32.mrf.mxu0
  %1559 = vdwg.mxu0
  %v1560 = vmul.f32 %v1557, 0.0034722222
  %v1561 = vmul.f32 %v1560, %v1560
  %v1563 = vrot.slane %v1561, 7
  %v1565 = vsub.f32 %v1560, %v1563
  %v1566 = vadd.f32 %v1565, 1e-05
  %v1567 = vrsqrt.pop %v1566
  %v1568 = vmul.f32 %v1567, %v864
  %v1570 = vrot.slane %v1568, 1
  %v1572 = vmul.f32 %v1560, %v1570
  %v1573 = vsub.f32 %v22, %v1572
  %v1575 = vlaneseq
  %v1576 = vshrl.u32 %v1575, 7
  %v1577 = vsub.s32 0, %v1576
  %v1578 = vrot.slane %v1573, %v1577
  %v1580 = vsel %vm780, %v1570, %v1578
  %v1582 = vsel %vm879, %v1580, 0
  %1584 = vmatprep.subr.mxu0 0.0
  %1585 = vmatpush1.msra.mxu0 0.0
  %1586 = vmatprep.subr.mxu0 0.0
  %1587 = vmatpush1.msra.mxu0 0.0
  %1588 = vmatprep.subr.mxu0 0.0
  %1589 = vmatpush1.msra.mxu0 0.0
  %1590 = vmatprep.subr.mxu0 0.0
  %1591 = vmatpush1.msra.mxu0 0.0
  %1592 = vmatprep.subr.mxu0 0.0
  %1593 = vmatpush1.msra.mxu0 0.0
  %1594 = vmatprep.subr.mxu0 0.0
  %1595 = vmatpush1.msra.mxu0 0.0
  %1596 = vmatprep.subr.mxu0 0.0
  %1597 = vmatpush1.msra.mxu0 0.0
  %1598 = vmatprep.subr.mxu0 0.0
  %1599 = vmatpush1.msra.mxu0 0.0
  %1600 = vmatprep.subr.mxu0 0.0
  %1601 = vmatpush1.msra.mxu0 0.0
  %1602 = vmatprep.subr.mxu0 0.0
  %1603 = vmatpush1.msra.mxu0 0.0
  %1604 = vmatprep.subr.mxu0 0.0
  %1605 = vmatpush1.msra.mxu0 0.0
  %1606 = vmatprep.subr.mxu0 0.0
  %1607 = vmatpush1.msra.mxu0 0.0
  %1608 = vmatprep.subr.mxu0 0.0
  %1609 = vmatpush1.msra.mxu0 0.0
  %1610 = vmatprep.subr.mxu0 0.0
  %1611 = vmatpush1.msra.mxu0 0.0
  %1612 = vmatprep.subr.mxu0 0.0
  %1613 = vmatpush1.msra.mxu0 0.0
  %1614 = vmatprep.subr.mxu0 0.0
  %1615 = vmatpush1.msra.mxu0 %v1462
  %1616 = vmatprep.subr.mxu0 0.0
  %1617 = vmatpush2.msra.mxu0 0.0
  %1618 = vmatprep.subr.mxu0 0.0
  %1619 = vmatpush2.msra.mxu0 0.0
  %1620 = vmatprep.subr.mxu0 0.0
  %1621 = vmatpush2.msra.mxu0 0.0
  %1622 = vmatprep.subr.mxu0 0.0
  %1623 = vmatpush2.msra.mxu0 0.0
  %1624 = vmatprep.subr.mxu0 0.0
  %1625 = vmatpush2.msra.mxu0 0.0
  %1626 = vmatprep.subr.mxu0 0.0
  %1627 = vmatpush2.msra.mxu0 0.0
  %1628 = vmatprep.subr.mxu0 0.0
  %1629 = vmatpush2.msra.mxu0 0.0
  %1630 = vmatprep.subr.mxu0 0.0
  %1631 = vmatpush2.msra.mxu0 0.0
  %1632 = vmatprep.subr.mxu0 0.0
  %1633 = vmatpush2.msra.mxu0 0.0
  %1634 = vmatprep.subr.mxu0 0.0
  %1635 = vmatpush2.msra.mxu0 0.0
  %1636 = vmatprep.subr.mxu0 0.0
  %1637 = vmatpush2.msra.mxu0 0.0
  %1638 = vmatprep.subr.mxu0 0.0
  %1639 = vmatpush2.msra.mxu0 0.0
  %1640 = vmatprep.subr.mxu0 0.0
  %1641 = vmatpush2.msra.mxu0 0.0
  %1642 = vmatprep.subr.mxu0 0.0
  %1643 = vmatpush2.msra.mxu0 0.0
  %1644 = vmatprep.subr.mxu0 0.0
  %1645 = vmatpush2.msra.mxu0 0.0
  %1646 = vmatprep.subr.mxu0 0.0
  %1647 = vmatpush2.msra.mxu0 0.0
  %1648 = vmatprep.mubr.f32.mxu0 0.0
  %1649 = vmatmul.mubr.f32.gmra.mxu0 %v1582
  %v1650 = vpop.f32.mrf.mxu0
  %v1651 = vadd.f32 0.0, %v1650
  %v1652 = vpop.f32.mrf.mxu0
  %1653 = vdwg.mxu0
  %v1654 = vlaneseq
  %v1655 = vshrl.u32 %v1654, 7
  %v1656 = vsub.s32 0, %v1655
  %v1657 = vrot.slane %v1651, %v1656
  %v1658 = vmul.f32 %v1396, %v1657
  %v1659 = vmul.f32 %v1397, %v1657
  %v1660 = vmul.f32 %v1398, %v1657
  %v1661 = vmul.f32 %v1399, %v1657
  %v1662 = vlaneseq
  %v1663 = vshrl.u32 %v1662, 7
  %v1664 = vsub.s32 1, %v1663
  %v1665 = vrot.slane %v1651, %v1664
  %v1666 = vadd.f32 %v1658, %v1665
  %v1667 = vadd.f32 %v1659, %v1665
  %v1668 = vadd.f32 %v1660, %v1665
  %v1669 = vadd.f32 %v1661, %v1665
  %v1670 = vmax.f32 %v1666, 0.0
  %v1671 = vmax.f32 %v1667, 0.0
  %v1672 = vmax.f32 %v1668, 0.0
  %v1673 = vmax.f32 %v1669, 0.0
  %1674 = vst [vmem:[%s5] sm:$0xff] %v1670
  %1675 = vst [vmem:[%s5 + $0x8] sm:$0xff] %v1671
  %1676 = vst [vmem:[%s5 + $0x10] sm:$0xff] %v1672
  %1677 = vst [vmem:[%s5 + $0x18] sm:$0xff] %v1673
  // Predicated region
  $region22: #{block_forward.1} parent=0 // pred_check
    _
  $region23: #{block_forward.1} parent=0 // pred_check_branch
    %1679 = sbr.rel (0) target = $region25
  $region24: #{block_forward.1} parent=0 // pred_region
    _
  $region25: #{block_forward.1} parent=0 // pred_fallthru
    _
  // Predicated region
  $region26: #{block_forward.1} parent=0 // pred_check
    _
  $region27: #{block_forward.1} parent=0 // pred_check_branch
    %1681 = sbr.rel (0) target = $region29
  $region28: #{block_forward.1} parent=0 // pred_region
    _
  $region29: #{block_forward.1} parent=0 // pred_fallthru
    _

</llo_original>
